<compile_context>
chip_gen: v5e
topology: v5e:2x2
jax: 0.10.0
libtpu: 0.0.40
codegen_flags: <defaults>
</compile_context>

<pallas_src>
import functools

import jax
import jax.numpy as jnp
from jax.experimental import pallas as pl
from jax.experimental.pallas import tpu as pltpu


def _quad(x):
    # TODO(synk): activation_quad's body is not in the provided snippet; using the
    # quadratic activation x*x (the usual "quad" in encrypted-inference benchmarks).
    return x * x


# ----------------------------------------------------------------------------
# Pallas kernel: fused BertEmbeddings + flattened 2-layer forward, one invocation
# ----------------------------------------------------------------------------
def bert_tiny_flatten_kernel(ids_ref, s400_ref, s256_ref, s512_ref, c_ref, o_ref,
                             *, S, SV, SD, SI, eps):
    dot = lambda a, b: jnp.dot(a, b, preferred_element_type=jnp.float32)

    ids = ids_ref[...]                                  # (B, S)    token ids as f32
    rmat = s400_ref[0:S, :]                             # (S, S*V)  id-repeat matrix
    colv = s400_ref[S:S + 1, :]                         # (1, S*V)  column -> vocab id
    w_big = s256_ref[0:SV, :]                           # (S*V,S*D) kron(I_S, word_emb)
    a_avg = s256_ref[SV:SV + SD, :]                     # (S*D,S*D) per-token block average
    g2 = s256_ref[SV + SD:SV + SD + SI, :]              # (S*I,S*D) final projection
    g0 = s512_ref[0:SD, :]                              # (S*D,S*I) layer 0 (LN + head-mix folded)
    g1 = s512_ref[SD:SD + SI, :]                        # (S*I,S*I) layer 1 (head-mix folded)
    b1 = c_ref[0:1, :]                                  # (1, S*I)
    b2 = c_ref[1:2, :]                                  # (1, S*I)
    addc = c_ref[2:3, 0:SD]                             # (1, S*D)  pos + token-type embedding
    b3 = c_ref[3:4, 0:SD]                               # (1, S*D)

    # ---- fused BertEmbeddings: one-hot gather (MXU) + LayerNorm --------------------
    ids_rep = dot(ids, rmat)                            # (B, S*V)  ids[b,s] repeated V times
    onehot = jnp.where(ids_rep == colv, 1.0, 0.0)       # (B, S*V)  exact small-int compare
    e = dot(onehot, w_big) + addc                       # (B, S*D)  word + pos + token-type
    mean = dot(e, a_avg)                                # per-token mean, broadcast in-block
    var = dot(e * e, a_avg) - mean * mean
    x = (e - mean) * jax.lax.rsqrt(var + eps)           # LN scale/shift folded into g0 / b1

    # ---- flattened forward: 3 lane-dense matmuls ------------------------------------
    h = _quad(dot(x, g0) + b1)                          # (B, S*I)
    h = _quad(dot(h, g1) + b2)                          # (B, S*I)
    o_ref[...] = dot(h, g2) + b3                        # (B, S*D)


# ----------------------------------------------------------------------------
# Per-call forward: only casts ids; everything else is precomputed constants
# ----------------------------------------------------------------------------
@jax.jit
def bert_tiny_flatten_forward(input_ids, slab400, slab256, slab512, consts):
    B, S = input_ids.shape
    SV = slab400.shape[1]
    SD = slab256.shape[1]
    SI = slab512.shape[1]
    D = SD // S

    ids_f32 = input_ids.astype(jnp.float32)             # the only per-call prep op
    vmem = lambda: pl.BlockSpec(memory_space=pltpu.MemorySpace.VMEM)

    out2d = pl.pallas_call(
        functools.partial(bert_tiny_flatten_kernel,
                          S=S, SV=SV, SD=SD, SI=SI, eps=1e-12),
        out_shape=jax.ShapeDtypeStruct((B, SD), jnp.float32),
        in_specs=[vmem() for _ in range(5)],             # full arrays resident in VMEM, no grid
        out_specs=vmem(),
    )(ids_f32, slab400, slab256, slab512, consts)

    return out2d.reshape(B, S, D)                        # free metadata reshape


# ----------------------------------------------------------------------------
# One-time parameter preparation (hoisted out of the per-call path)
# ----------------------------------------------------------------------------
def prepare_flattened_params(p, *, S, D, I, H, V):
    dh = I // H
    SD, SI, SV = S * D, S * I, S * V
    eye_s = jnp.eye(S, dtype=jnp.float32)
    hp = jax.lax.Precision.HIGHEST

    # per-head seq-mixing folded into flattened layer weights (exact elementwise build)
    head_of_j = jnp.arange(I) // dh
    m0_j = p["init_M"][head_of_j]                        # (I,S,S): M0[h(j)][t,s]
    m1_j = p["inter_M"][head_of_j]
    # G0[t*D+d, s*I+j] = M0[h(j)][t,s] * init_d[j,d]
    g0 = (m0_j.transpose(1, 2, 0)[:, None, :, :] *
          p["init_d"].T[None, :, None, :]).reshape(SD, SI)
    # G1[t*I+i, s*I+j] = M1[h(j)][t,s] * inter_d[j,i]
    g1 = (m1_j.transpose(1, 2, 0)[:, None, :, :] *
          p["inter_d"].T[None, :, None, :]).reshape(SI, SI)
    # G2[t*I+j, s*D+d] = (t==s) * final_d[d,j]
    g2 = jnp.kron(eye_s, p["final_d"].T)                 # (S*I, S*D)

    b1 = jnp.tile(p["init_b"], S)                        # (S*I,)
    b2 = jnp.tile(p["inter_b"], S)                       # (S*I,)
    b3 = jnp.tile(p["final_b"], S)                       # (S*D,)

    # fold embedding LayerNorm scale/shift into g0 / b1
    ln_w = jnp.tile(p["emb_ln_w"], S)
    ln_b = jnp.tile(p["emb_ln_b"], S)
    b1 = b1 + jnp.dot(ln_b, g0, precision=hp)
    g0 = ln_w[:, None] * g0

    # fused-embedding constants
    w_big = jnp.kron(eye_s, p["word_emb"])                             # (S*V, S*D)
    a_avg = jnp.kron(eye_s, jnp.full((D, D), 1.0 / D, jnp.float32))    # (S*D, S*D)
    rmat = jnp.kron(eye_s, jnp.ones((1, V), jnp.float32))              # (S, S*V)
    colv = jnp.tile(jnp.arange(V, dtype=jnp.float32), S)               # (S*V,)
    addc = (p["pos_emb"][:S] + p["tok_emb"][0][None, :]).reshape(SD)   # (S*D,)

    # pack into a few sublane-aligned slabs (fewer DMA descriptors)
    slab400 = jnp.concatenate([rmat, colv[None, :]], axis=0)           # (S+1, S*V)
    slab256 = jnp.concatenate([w_big, a_avg, g2], axis=0)              # (S*V+S*D+S*I, S*D)
    slab512 = jnp.concatenate([g0, g1], axis=0)                        # (S*D+S*I, S*I)
    consts = jnp.zeros((8, SI), jnp.float32)
    consts = consts.at[0, :].set(b1).at[1, :].set(b2)
    consts = consts.at[2, :SD].set(addc).at[3, :SD].set(b3)

    return dict(slab400=slab400, slab256=slab256, slab512=slab512, consts=consts)


# ----------------------------------------------------------------------------
# Parameter setup (mirrors BertTinyFlatten.__init__ flattening) -- plain JAX glue
# ----------------------------------------------------------------------------
def make_params(key, *, D, I, H, S, V, MAX_POS=64):
    ks = iter(jax.random.split(key, 40))

    def lin(out_f, in_f):
        bound = 1.0 / jnp.sqrt(jnp.float32(in_f))
        w = jax.random.uniform(next(ks), (out_f, in_f), jnp.float32, -bound, bound)
        b = jax.random.uniform(next(ks), (out_f,), jnp.float32, -bound, bound)
        return w, b

    def ln(dim):
        # NOTE: the torch module zero-initializes LayerNorm weights and M, which would
        # zero the whole forward; use non-trivial values for a synthetic benchmark.
        w = 1.0 + 0.1 * jax.random.normal(next(ks), (dim,), jnp.float32)
        b = 0.1 * jax.random.normal(next(ks), (dim,), jnp.float32)
        return w, b

    Wv_w, Wv_b = lin(D, D)
    d0_w, d0_b = lin(D, D)
    LN_w, LN_b = ln(D)
    FF0_w, FF0_b = lin(I, D)
    FF1_w, FF1_b = lin(D, I)
    LNFF_w, LNFF_b = ln(D)
    Wv1_w, Wv1_b = lin(D, D)
    d01_w, d01_b = lin(D, D)
    LN_w1, LN_b1 = ln(D)
    FF01_w, FF01_b = lin(I, D)
    FF11_w, FF11_b = lin(D, I)
    LNFF_w1, LNFF_b1 = ln(D)

    M0 = jax.random.normal(next(ks), (H, S, S), jnp.float32) / jnp.sqrt(jnp.float32(S))
    M1 = jax.random.normal(next(ks), (H, S, S), jnp.float32) / jnp.sqrt(jnp.float32(S))

    # flattening, exactly as in __init__
    init_d = Wv_w @ d0_w
    init_d = init_d * LN_w
    init_d = FF0_w @ init_d                                 # (I, D)
    init_b = FF0_w @ LN_b + FF0_w @ d0_b + FF0_b            # (I,)

    t = (FF1_w.T @ Wv1_w) * LNFF_w                          # (I, D)
    t = (t @ d01_w).T                                       # (D, I)
    t = t * LN_w1[:, None]
    inter_d = FF01_w @ t                                    # (I, I)

    p1 = FF01_w @ (((FF1_b @ Wv1_w) @ d01_w) * LNFF_w1)
    p2 = FF01_w @ ((Wv1_b @ d01_w) * LNFF_w1)
    p3 = FF01_w @ (d01_b * LNFF_w1)
    p4 = FF01_b
    p5 = ((LNFF_b @ (Wv1_w @ d01_w)) * LNFF_w1) @ FF01_w.T
    p6 = LN_b1 @ FF01_w.T
    inter_b = p1 + p2 + p3 + p4 + p5 + p6                   # (I,)

    final_d = FF11_w * LNFF_w1[:, None]                     # (D, I)
    final_b = FF11_b * LNFF_w1 + LNFF_b1                    # (D,)

    # TODO(synk): BertEmbeddings class not in snippet; standard BERT embeddings
    # (word + position + token-type, LayerNorm, dropout=identity at eval) assumed.
    word_emb = 0.1 * jax.random.normal(next(ks), (V, D), jnp.float32)
    pos_emb = 0.1 * jax.random.normal(next(ks), (MAX_POS, D), jnp.float32)
    tok_emb = 0.1 * jax.random.normal(next(ks), (2, D), jnp.float32)
    emb_ln_w, emb_ln_b = ln(D)

    return dict(init_d=init_d, init_M=M0, init_b=init_b,
                inter_d=inter_d, inter_M=M1, inter_b=inter_b,
                final_d=final_d, final_b=final_b,
                word_emb=word_emb, pos_emb=pos_emb, tok_emb=tok_emb,
                emb_ln_w=emb_ln_w, emb_ln_b=emb_ln_b)


# ----------------------------------------------------------------------------
# Pure-JAX reference (HIGHEST-precision matmuls, for correctness check)
# ----------------------------------------------------------------------------
def bert_embeddings(input_ids, p, eps=1e-12):
    B, S = input_ids.shape
    e = p["word_emb"][input_ids] + p["pos_emb"][:S][None, :, :] + p["tok_emb"][0][None, None, :]
    mu = e.mean(-1, keepdims=True)
    var = ((e - mu) ** 2).mean(-1, keepdims=True)
    e = (e - mu) / jnp.sqrt(var + eps)
    return e * p["emb_ln_w"] + p["emb_ln_b"]


def multihead_mut_ref(x, M, H):
    B, S, d = x.shape
    xr = x.reshape(B, S, H, d // H)
    out = jnp.einsum('hts,bthc->bshc', M, xr, precision=jax.lax.Precision.HIGHEST)
    return out.reshape(B, S, d)


def forward_ref(emb, p, H):
    hp = jax.lax.Precision.HIGHEST
    h = jnp.dot(emb, p["init_d"].T, precision=hp)
    h = multihead_mut_ref(h, p["init_M"], H)
    h = _quad(h + p["init_b"])
    h = jnp.dot(h, p["inter_d"].T, precision=hp)
    h = multihead_mut_ref(h, p["inter_M"], H)
    h = _quad(h + p["inter_b"])
    return jnp.dot(h, p["final_d"].T, precision=hp) + p["final_b"]


# ----------------------------------------------------------------------------
if __name__ == "__main__":
    B, S, D, I, H, V = 2, 8, 32, 64, 2, 50   # batch, seq, hidden, intermediate, heads, vocab

    key = jax.random.PRNGKey(0)
    kp, kx = jax.random.split(key)
    params = make_params(kp, D=D, I=I, H=H, S=S, V=V)
    input_ids = jax.random.randint(kx, (B, S), 0, V, dtype=jnp.int32)

    packed = prepare_flattened_params(params, S=S, D=D, I=I, H=H, V=V)   # one-time prep

    out = bert_tiny_flatten_forward(input_ids, packed["slab400"], packed["slab256"],
                                    packed["slab512"], packed["consts"])
    out = jax.block_until_ready(out)

    # reference (separate embeddings + unflattened head-mix path)
    emb = bert_embeddings(input_ids, params)
    ref = forward_ref(emb, params, H)

    assert out.shape == (B, S, D), out.shape
    # Scale-relative error: reference uses HIGHEST-precision matmuls; 1e-2 bound covers
    # the MXU's default f32 contract precision in-kernel while catching any layout /
    # indexing bug (those produce O(1) relative error).
    scale = jnp.max(jnp.abs(ref)) + 1e-12
    rel_err = jnp.max(jnp.abs(out - ref)) / scale
    assert rel_err < 1e-2, f"scale-relative err {rel_err}"
    print("KERNEL_OK")
</pallas_src>

<mosaic_0001>
module attributes {stable_mosaic.version = 11 : i64} {
  func.func @bert_tiny_flatten_kernel(%arg0: memref<2x8xf32, #tpu.memory_space<vmem>>, %arg1: memref<9x400xf32, #tpu.memory_space<vmem>>, %arg2: memref<1168x256xf32, #tpu.memory_space<vmem>>, %arg3: memref<768x512xf32, #tpu.memory_space<vmem>>, %arg4: memref<8x512xf32, #tpu.memory_space<vmem>>, %arg5: memref<2x256xf32, #tpu.memory_space<vmem>>) attributes {dimension_semantics = [], scalar_prefetch = 0 : i64, scratch_operands = 0 : i64, tpu.core_type = #tpu.core_type<tc>} {
    %c0 = arith.constant 0 : index
    %c0_0 = arith.constant 0 : index
    %0 = vector.load %arg0[%c0, %c0_0] : memref<2x8xf32, #tpu.memory_space<vmem>>, vector<2x8xf32>
    %c0_1 = arith.constant 0 : index
    %c0_2 = arith.constant 0 : index
    %1 = vector.load %arg1[%c0_1, %c0_2] : memref<9x400xf32, #tpu.memory_space<vmem>>, vector<8x400xf32>
    %c8 = arith.constant 8 : index
    %c0_3 = arith.constant 0 : index
    %2 = vector.load %arg1[%c8, %c0_3] : memref<9x400xf32, #tpu.memory_space<vmem>>, vector<1x400xf32>
    %c0_4 = arith.constant 0 : index
    %c0_5 = arith.constant 0 : index
    %3 = vector.load %arg2[%c0_4, %c0_5] : memref<1168x256xf32, #tpu.memory_space<vmem>>, vector<400x256xf32>
    %c400 = arith.constant 400 : index
    %c0_6 = arith.constant 0 : index
    %4 = vector.load %arg2[%c400, %c0_6] : memref<1168x256xf32, #tpu.memory_space<vmem>>, vector<256x256xf32>
    %c656 = arith.constant 656 : index
    %c0_7 = arith.constant 0 : index
    %5 = vector.load %arg2[%c656, %c0_7] : memref<1168x256xf32, #tpu.memory_space<vmem>>, vector<512x256xf32>
    %c0_8 = arith.constant 0 : index
    %c0_9 = arith.constant 0 : index
    %6 = vector.load %arg3[%c0_8, %c0_9] : memref<768x512xf32, #tpu.memory_space<vmem>>, vector<256x512xf32>
    %c256 = arith.constant 256 : index
    %c0_10 = arith.constant 0 : index
    %7 = vector.load %arg3[%c256, %c0_10] : memref<768x512xf32, #tpu.memory_space<vmem>>, vector<512x512xf32>
    %c0_11 = arith.constant 0 : index
    %c0_12 = arith.constant 0 : index
    %8 = vector.load %arg4[%c0_11, %c0_12] : memref<8x512xf32, #tpu.memory_space<vmem>>, vector<1x512xf32>
    %c1 = arith.constant 1 : index
    %c0_13 = arith.constant 0 : index
    %9 = vector.load %arg4[%c1, %c0_13] : memref<8x512xf32, #tpu.memory_space<vmem>>, vector<1x512xf32>
    %c2 = arith.constant 2 : index
    %c0_14 = arith.constant 0 : index
    %10 = vector.load %arg4[%c2, %c0_14] : memref<8x512xf32, #tpu.memory_space<vmem>>, vector<1x256xf32>
    %c3 = arith.constant 3 : index
    %c0_15 = arith.constant 0 : index
    %11 = vector.load %arg4[%c3, %c0_15] : memref<8x512xf32, #tpu.memory_space<vmem>>, vector<1x256xf32>
    %cst = arith.constant dense<0.000000e+00> : vector<2x400xf32>
    %12 = tpu.matmul %0, %1, %cst {dimension_numbers = #tpu.dot_dimension_numbers<[1], [0], [0], [1], [0, 0, 1, 1], [], []>} : vector<2x8xf32>, vector<8x400xf32>, vector<2x400xf32> -> vector<2x400xf32>
    %13 = vector.broadcast %2 : vector<1x400xf32> to vector<2x400xf32>
    %14 = arith.cmpf oeq, %12, %13 : vector<2x400xf32>
    %cst_16 = arith.constant 1.000000e+00 : f32
    %cst_17 = arith.constant 0.000000e+00 : f32
    %15 = vector.broadcast %cst_16 : f32 to vector<2x400xf32>
    %16 = vector.broadcast %cst_17 : f32 to vector<2x400xf32>
    %17 = arith.select %14, %15, %16 : vector<2x400xi1>, vector<2x400xf32>
    %cst_18 = arith.constant dense<0.000000e+00> : vector<2x256xf32>
    %18 = tpu.matmul %17, %3, %cst_18 {dimension_numbers = #tpu.dot_dimension_numbers<[1], [0], [0], [1], [0, 0, 1, 1], [], []>} : vector<2x400xf32>, vector<400x256xf32>, vector<2x256xf32> -> vector<2x256xf32>
    %19 = vector.broadcast %10 : vector<1x256xf32> to vector<2x256xf32>
    %20 = arith.addf %18, %19 : vector<2x256xf32>
    %cst_19 = arith.constant dense<0.000000e+00> : vector<2x256xf32>
    %21 = tpu.matmul %20, %4, %cst_19 {dimension_numbers = #tpu.dot_dimension_numbers<[1], [0], [0], [1], [0, 0, 1, 1], [], []>} : vector<2x256xf32>, vector<256x256xf32>, vector<2x256xf32> -> vector<2x256xf32>
    %22 = arith.mulf %20, %20 : vector<2x256xf32>
    %cst_20 = arith.constant dense<0.000000e+00> : vector<2x256xf32>
    %23 = tpu.matmul %22, %4, %cst_20 {dimension_numbers = #tpu.dot_dimension_numbers<[1], [0], [0], [1], [0, 0, 1, 1], [], []>} : vector<2x256xf32>, vector<256x256xf32>, vector<2x256xf32> -> vector<2x256xf32>
    %24 = arith.mulf %21, %21 : vector<2x256xf32>
    %25 = arith.subf %23, %24 : vector<2x256xf32>
    %26 = arith.subf %20, %21 : vector<2x256xf32>
    %cst_21 = arith.constant 9.99999996E-13 : f32
    %27 = vector.broadcast %cst_21 : f32 to vector<2x256xf32>
    %28 = arith.addf %25, %27 : vector<2x256xf32>
    %29 = math.rsqrt %28 : vector<2x256xf32>
    %30 = arith.mulf %26, %29 : vector<2x256xf32>
    %cst_22 = arith.constant dense<0.000000e+00> : vector<2x512xf32>
    %31 = tpu.matmul %30, %6, %cst_22 {dimension_numbers = #tpu.dot_dimension_numbers<[1], [0], [0], [1], [0, 0, 1, 1], [], []>} : vector<2x256xf32>, vector<256x512xf32>, vector<2x512xf32> -> vector<2x512xf32>
    %32 = vector.broadcast %8 : vector<1x512xf32> to vector<2x512xf32>
    %33 = arith.addf %31, %32 : vector<2x512xf32>
    %34 = arith.mulf %33, %33 : vector<2x512xf32>
    %cst_23 = arith.constant dense<0.000000e+00> : vector<2x512xf32>
    %35 = tpu.matmul %34, %7, %cst_23 {dimension_numbers = #tpu.dot_dimension_numbers<[1], [0], [0], [1], [0, 0, 1, 1], [], []>} : vector<2x512xf32>, vector<512x512xf32>, vector<2x512xf32> -> vector<2x512xf32>
    %36 = vector.broadcast %9 : vector<1x512xf32> to vector<2x512xf32>
    %37 = arith.addf %35, %36 : vector<2x512xf32>
    %38 = arith.mulf %37, %37 : vector<2x512xf32>
    %cst_24 = arith.constant dense<0.000000e+00> : vector<2x256xf32>
    %39 = tpu.matmul %38, %5, %cst_24 {dimension_numbers = #tpu.dot_dimension_numbers<[1], [0], [0], [1], [0, 0, 1, 1], [], []>} : vector<2x512xf32>, vector<512x256xf32>, vector<2x256xf32> -> vector<2x256xf32>
    %40 = vector.broadcast %11 : vector<1x256xf32> to vector<2x256xf32>
    %41 = arith.addf %39, %40 : vector<2x256xf32>
    %c0_25 = arith.constant 0 : index
    %c0_26 = arith.constant 0 : index
    %42 = vector.load %arg5[%c0_25, %c0_26] : memref<2x256xf32, #tpu.memory_space<vmem>>, vector<2x256xf32>
    tpu.vector_store %arg5[%c0_25, %c0_26], %41 {strides = array<i32>} : memref<2x256xf32, #tpu.memory_space<vmem>>, vector<2x256xf32>,
    return
  }
}

</mosaic_0001>

<llo_original>
// kernel: bert_tiny_flatten_forward.1
$region0: #{bert_tiny_flatten_forward.1}
  #allocation0 [shape = 'u32[]', space=smem, size = 0x4, offset = 0x4, fixed_abs, tag = 'smem constant byte address 0x4 - core index']
  #allocation1 [shape = 'u32[72,128]{1,0:T(1,128)}', space=vmem, size = 0x9000, scoped, tag = 'internal scratch']
  %s0 = inlined_call_operand.vmem [shape: f32[2,8], index: 0, kind: input, shape index: {}]
  %s1 = inlined_call_operand.hbm [shape: f32[9,400], index: 1, kind: input, shape index: {}]
  %s2 = inlined_call_operand.hbm [shape: f32[1168,256], index: 2, kind: input, shape index: {}]
  %s3 = inlined_call_operand.hbm [shape: f32[768,512], index: 3, kind: input, shape index: {}]
  %s4 = inlined_call_operand.hbm [shape: f32[8,512], index: 4, kind: input, shape index: {}]
  %s5 = inlined_call_operand.vmem [shape: f32[2,256], index: 5, kind: output, shape index: {}]
  %s6 = sld [smem:[#allocation0]]
  $region46: #{bert_tiny_flatten_forward.1} parent=0
    _
  %s8 = ssub.s32 1, %s6
  %s9 = scalar_select 0, %s8, %s6
  $region1: #{bert_tiny_flatten_forward.1} parent=0
    #allocation2 [shape = 'u8[32768]{0}', space=vmem, size = 0x8000, scoped, tag = 'input window, operand 1, single buffered']
    #allocation3 [shape = 's32[1]{0}', space=sflag, size = 0x4, scoped, tag = 'scoped memory for bert_tiny_flatten_forward.1']
    #allocation4 [shape = 'u8[1196032]{0}', space=vmem, size = 0x124000, scoped, tag = 'input window, operand 2, single buffered']
    #allocation5 [shape = 's32[1]{0}', space=sflag, size = 0x4, scoped, tag = 'scoped memory for bert_tiny_flatten_forward.1']
    #allocation6 [shape = 'u8[1572864]{0}', space=vmem, size = 0x180000, scoped, tag = 'input window, operand 3, single buffered']
    #allocation7 [shape = 'u8[16384]{0}', space=vmem, size = 0x4000, scoped, tag = 'input window, operand 4, single buffered']
    #allocation8 [shape = 's32[1]{0}', space=sflag, size = 0x4, scoped, tag = 'scoped memory for bert_tiny_flatten_forward.1']
    %10 = vsyncpa [#allocation3], 0
    %11 = vsyncpa [#allocation5], 0
    %12 = vsyncpa [#allocation8], 0
    // Predicated region
    $region2: #{bert_tiny_flatten_forward.1} parent=1 // pred_check
      _
    $region3: #{bert_tiny_flatten_forward.1} parent=1 // pred_check_branch
      %14 = sbr.rel (0) target = $region5
    $region4: #{bert_tiny_flatten_forward.1} parent=1 // pred_region
      _
    $region5: #{bert_tiny_flatten_forward.1} parent=1 // pred_fallthru
      _
    // Predicated region
    $region6: #{bert_tiny_flatten_forward.1} parent=1 // pred_check
      _
    $region7: #{bert_tiny_flatten_forward.1} parent=1 // pred_check_branch
      %16 = sbr.rel (0) target = $region9
    $region8: #{bert_tiny_flatten_forward.1} parent=1 // pred_region
      %18 = vsyncadd [#allocation3], 0
      %s19 = sshll.u32 %s1, 4
      %s20 = int_to_ptr.hbm [resolvable:$true] %s19
      %s21 = sshll.u32 [#allocation2], 4
      %s22 = int_to_ptr.vmem [resolvable:$true] %s21
      %27 = dma.hbm_to_vmem [thread:$0]  %s20, 1024, %s22, [#allocation3], 512, 512, 32
    $region9: #{bert_tiny_flatten_forward.1} parent=1 // pred_fallthru
      _
    // Predicated region
    $region10: #{bert_tiny_flatten_forward.1} parent=1 // pred_check
      _
    $region11: #{bert_tiny_flatten_forward.1} parent=1 // pred_check_branch
      %29 = sbr.rel (0) target = $region13
    $region12: #{bert_tiny_flatten_forward.1} parent=1 // pred_region
      %31 = vsyncadd [#allocation5], 0
      %s32 = sshll.u32 %s2, 4
      %s33 = int_to_ptr.hbm [resolvable:$true] %s32
      %s34 = sshll.u32 [#allocation4], 4
      %s35 = int_to_ptr.vmem [resolvable:$true] %s34
      %40 = dma.hbm_to_vmem [thread:$0]  %s33, 37376, %s35, [#allocation5], 256, 256, 16
    $region13: #{bert_tiny_flatten_forward.1} parent=1 // pred_fallthru
      _
    // Predicated region
    $region14: #{bert_tiny_flatten_forward.1} parent=1 // pred_check
      _
    $region15: #{bert_tiny_flatten_forward.1} parent=1 // pred_check_branch
      %42 = sbr.rel (0) target = $region17
    $region16: #{bert_tiny_flatten_forward.1} parent=1 // pred_region
      %44 = vsyncadd [#allocation5], 0
      %s45 = sshll.u32 %s3, 4
      %s46 = int_to_ptr.hbm [resolvable:$true] %s45
      %s47 = sshll.u32 [#allocation6], 4
      %s48 = int_to_ptr.vmem [resolvable:$true] %s47
      %53 = dma.hbm_to_vmem [thread:$0]  %s46, 49152, %s48, [#allocation5], 512, 512, 32
    $region17: #{bert_tiny_flatten_forward.1} parent=1 // pred_fallthru
      _
    // Predicated region
    $region18: #{bert_tiny_flatten_forward.1} parent=1 // pred_check
      _
    $region19: #{bert_tiny_flatten_forward.1} parent=1 // pred_check_branch
      %55 = sbr.rel (0) target = $region21
    $region20: #{bert_tiny_flatten_forward.1} parent=1 // pred_region
      %57 = vsyncadd [#allocation8], 0
      %s59 = sshll.u32 %s4, 4
      %s60 = int_to_ptr.hbm [resolvable:$true] %s59
      %s61 = sshll.u32 [#allocation7], 4
      %s62 = int_to_ptr.vmem [resolvable:$true] %s61
      %64 = dma.hbm_to_vmem [thread:$0]  %s60, 512, %s62, [#allocation8]
    $region21: #{bert_tiny_flatten_forward.1} parent=1 // pred_fallthru
      _
    // Predicated region
    $region22: #{bert_tiny_flatten_forward.1} parent=1 // pred_check
      _
    $region23: #{bert_tiny_flatten_forward.1} parent=1 // pred_check_branch
      %66 = sbr.rel (0) target = $region25
    $region24: #{bert_tiny_flatten_forward.1} parent=1 // pred_region
      %68 = dma.done [#allocation3], 1024
    $region25: #{bert_tiny_flatten_forward.1} parent=1 // pred_fallthru
      _
    // Predicated region
    $region26: #{bert_tiny_flatten_forward.1} parent=1 // pred_check
      _
    $region27: #{bert_tiny_flatten_forward.1} parent=1 // pred_check_branch
      %70 = sbr.rel (0) target = $region29
    $region28: #{bert_tiny_flatten_forward.1} parent=1 // pred_region
      %72 = dma.done [#allocation5], 37376
    $region29: #{bert_tiny_flatten_forward.1} parent=1 // pred_fallthru
      _
    // Predicated region
    $region30: #{bert_tiny_flatten_forward.1} parent=1 // pred_check
      _
    $region31: #{bert_tiny_flatten_forward.1} parent=1 // pred_check_branch
      %74 = sbr.rel (0) target = $region33
    $region32: #{bert_tiny_flatten_forward.1} parent=1 // pred_region
      %76 = dma.done [#allocation5], 49152
    $region33: #{bert_tiny_flatten_forward.1} parent=1 // pred_fallthru
      _
    // Predicated region
    $region34: #{bert_tiny_flatten_forward.1} parent=1 // pred_check
      _
    $region35: #{bert_tiny_flatten_forward.1} parent=1 // pred_check_branch
      %78 = sbr.rel (0) target = $region37
    $region36: #{bert_tiny_flatten_forward.1} parent=1 // pred_region
      %80 = dma.done [#allocation8], 512
    $region37: #{bert_tiny_flatten_forward.1} parent=1 // pred_fallthru
      _
    %v81 = vld [vmem:[%s0] sm:$0x3]
    %v82 = vld [vmem:[#allocation2] sm:$0xff]
    %v83 = vld [vmem:[#allocation2 + $0x8] sm:$0xff]
    %v84 = vld [vmem:[#allocation2 + $0x10] sm:$0xff]
    %v85 = vld [vmem:[#allocation2 + $0x18] sm:$0xff]
    %s86 = scalar_lea.vmem [#allocation2], 32
    %v87 = vld [vmem:[%s86] ss:$8 sm:$0xf]
    %v88 = vld [vmem:[#allocation4] sm:$0xff]
    %v89 = vld [vmem:[#allocation4 + $0x8] sm:$0xff]
    %v90 = vld [vmem:[#allocation4 + $0x10] sm:$0xff]
    %v91 = vld [vmem:[#allocation4 + $0x18] sm:$0xff]
    %v92 = vld [vmem:[#allocation4 + $0x20] sm:$0xff]
    %v93 = vld [vmem:[#allocation4 + $0x28] sm:$0xff]
    %v94 = vld [vmem:[#allocation4 + $0x30] sm:$0xff]
    %v95 = vld [vmem:[#allocation4 + $0x38] sm:$0xff]
    %v96 = vld [vmem:[#allocation4 + $0x40] sm:$0xff]
    %v97 = vld [vmem:[#allocation4 + $0x48] sm:$0xff]
    %v98 = vld [vmem:[#allocation4 + $0x50] sm:$0xff]
    %v99 = vld [vmem:[#allocation4 + $0x58] sm:$0xff]
    %v100 = vld [vmem:[#allocation4 + $0x60] sm:$0xff]
    %v101 = vld [vmem:[#allocation4 + $0x68] sm:$0xff]
    %v102 = vld [vmem:[#allocation4 + $0x70] sm:$0xff]
    %v103 = vld [vmem:[#allocation4 + $0x78] sm:$0xff]
    %v104 = vld [vmem:[#allocation4 + $0x80] sm:$0xff]
    %v105 = vld [vmem:[#allocation4 + $0x88] sm:$0xff]
    %v106 = vld [vmem:[#allocation4 + $0x90] sm:$0xff]
    %v107 = vld [vmem:[#allocation4 + $0x98] sm:$0xff]
    %v108 = vld [vmem:[#allocation4 + $0xa0] sm:$0xff]
    %v109 = vld [vmem:[#allocation4 + $0xa8] sm:$0xff]
    %v110 = vld [vmem:[#allocation4 + $0xb0] sm:$0xff]
    %v111 = vld [vmem:[#allocation4 + $0xb8] sm:$0xff]
    %v112 = vld [vmem:[#allocation4 + $0xc0] sm:$0xff]
    %v113 = vld [vmem:[#allocation4 + $0xc8] sm:$0xff]
    %v114 = vld [vmem:[#allocation4 + $0xd0] sm:$0xff]
    %v115 = vld [vmem:[#allocation4 + $0xd8] sm:$0xff]
    %v116 = vld [vmem:[#allocation4 + $0xe0] sm:$0xff]
    %v117 = vld [vmem:[#allocation4 + $0xe8] sm:$0xff]
    %v118 = vld [vmem:[#allocation4 + $0xf0] sm:$0xff]
    %v119 = vld [vmem:[#allocation4 + $0xf8] sm:$0xff]
    %v120 = vld [vmem:[#allocation4 + $0x100] sm:$0xff]
    %v121 = vld [vmem:[#allocation4 + $0x108] sm:$0xff]
    %v122 = vld [vmem:[#allocation4 + $0x110] sm:$0xff]
    %v123 = vld [vmem:[#allocation4 + $0x118] sm:$0xff]
    %v124 = vld [vmem:[#allocation4 + $0x120] sm:$0xff]
    %v125 = vld [vmem:[#allocation4 + $0x128] sm:$0xff]
    %v126 = vld [vmem:[#allocation4 + $0x130] sm:$0xff]
    %v127 = vld [vmem:[#allocation4 + $0x138] sm:$0xff]
    %v128 = vld [vmem:[#allocation4 + $0x140] sm:$0xff]
    %v129 = vld [vmem:[#allocation4 + $0x148] sm:$0xff]
    %v130 = vld [vmem:[#allocation4 + $0x150] sm:$0xff]
    %v131 = vld [vmem:[#allocation4 + $0x158] sm:$0xff]
    %v132 = vld [vmem:[#allocation4 + $0x160] sm:$0xff]
    %v133 = vld [vmem:[#allocation4 + $0x168] sm:$0xff]
    %v134 = vld [vmem:[#allocation4 + $0x170] sm:$0xff]
    %v135 = vld [vmem:[#allocation4 + $0x178] sm:$0xff]
    %v136 = vld [vmem:[#allocation4 + $0x180] sm:$0xff]
    %v137 = vld [vmem:[#allocation4 + $0x188] sm:$0xff]
    %v138 = vld [vmem:[#allocation4 + $0x190] sm:$0xff]
    %v139 = vld [vmem:[#allocation4 + $0x198] sm:$0xff]
    %v140 = vld [vmem:[#allocation4 + $0x1a0] sm:$0xff]
    %v141 = vld [vmem:[#allocation4 + $0x1a8] sm:$0xff]
    %v142 = vld [vmem:[#allocation4 + $0x1b0] sm:$0xff]
    %v143 = vld [vmem:[#allocation4 + $0x1b8] sm:$0xff]
    %v144 = vld [vmem:[#allocation4 + $0x1c0] sm:$0xff]
    %v145 = vld [vmem:[#allocation4 + $0x1c8] sm:$0xff]
    %v146 = vld [vmem:[#allocation4 + $0x1d0] sm:$0xff]
    %v147 = vld [vmem:[#allocation4 + $0x1d8] sm:$0xff]
    %v148 = vld [vmem:[#allocation4 + $0x1e0] sm:$0xff]
    %v149 = vld [vmem:[#allocation4 + $0x1e8] sm:$0xff]
    %v150 = vld [vmem:[#allocation4 + $0x1f0] sm:$0xff]
    %v151 = vld [vmem:[#allocation4 + $0x1f8] sm:$0xff]
    %v152 = vld [vmem:[#allocation4 + $0x200] sm:$0xff]
    %v153 = vld [vmem:[#allocation4 + $0x208] sm:$0xff]
    %v154 = vld [vmem:[#allocation4 + $0x210] sm:$0xff]
    %v155 = vld [vmem:[#allocation4 + $0x218] sm:$0xff]
    %v156 = vld [vmem:[#allocation4 + $0x220] sm:$0xff]
    %v157 = vld [vmem:[#allocation4 + $0x228] sm:$0xff]
    %v158 = vld [vmem:[#allocation4 + $0x230] sm:$0xff]
    %v159 = vld [vmem:[#allocation4 + $0x238] sm:$0xff]
    %v160 = vld [vmem:[#allocation4 + $0x240] sm:$0xff]
    %v161 = vld [vmem:[#allocation4 + $0x248] sm:$0xff]
    %v162 = vld [vmem:[#allocation4 + $0x250] sm:$0xff]
    %v163 = vld [vmem:[#allocation4 + $0x258] sm:$0xff]
    %v164 = vld [vmem:[#allocation4 + $0x260] sm:$0xff]
    %v165 = vld [vmem:[#allocation4 + $0x268] sm:$0xff]
    %v166 = vld [vmem:[#allocation4 + $0x270] sm:$0xff]
    %v167 = vld [vmem:[#allocation4 + $0x278] sm:$0xff]
    %v168 = vld [vmem:[#allocation4 + $0x280] sm:$0xff]
    %v169 = vld [vmem:[#allocation4 + $0x288] sm:$0xff]
    %v170 = vld [vmem:[#allocation4 + $0x290] sm:$0xff]
    %v171 = vld [vmem:[#allocation4 + $0x298] sm:$0xff]
    %v172 = vld [vmem:[#allocation4 + $0x2a0] sm:$0xff]
    %v173 = vld [vmem:[#allocation4 + $0x2a8] sm:$0xff]
    %v174 = vld [vmem:[#allocation4 + $0x2b0] sm:$0xff]
    %v175 = vld [vmem:[#allocation4 + $0x2b8] sm:$0xff]
    %v176 = vld [vmem:[#allocation4 + $0x2c0] sm:$0xff]
    %v177 = vld [vmem:[#allocation4 + $0x2c8] sm:$0xff]
    %v178 = vld [vmem:[#allocation4 + $0x2d0] sm:$0xff]
    %v179 = vld [vmem:[#allocation4 + $0x2d8] sm:$0xff]
    %v180 = vld [vmem:[#allocation4 + $0x2e0] sm:$0xff]
    %v181 = vld [vmem:[#allocation4 + $0x2e8] sm:$0xff]
    %v182 = vld [vmem:[#allocation4 + $0x2f0] sm:$0xff]
    %v183 = vld [vmem:[#allocation4 + $0x2f8] sm:$0xff]
    %v184 = vld [vmem:[#allocation4 + $0x300] sm:$0xff]
    %v185 = vld [vmem:[#allocation4 + $0x308] sm:$0xff]
    %v186 = vld [vmem:[#allocation4 + $0x310] sm:$0xff]
    %v187 = vld [vmem:[#allocation4 + $0x318] sm:$0xff]
    %v188 = vld [vmem:[#allocation4 + $0x320] sm:$0xff]
    %v189 = vld [vmem:[#allocation4 + $0x328] sm:$0xff]
    %v190 = vld [vmem:[#allocation4 + $0x330] sm:$0xff]
    %v191 = vld [vmem:[#allocation4 + $0x338] sm:$0xff]
    %v192 = vld [vmem:[#allocation4 + $0x340] sm:$0xff]
    %v193 = vld [vmem:[#allocation4 + $0x348] sm:$0xff]
    %v194 = vld [vmem:[#allocation4 + $0x350] sm:$0xff]
    %v195 = vld [vmem:[#allocation4 + $0x358] sm:$0xff]
    %v196 = vld [vmem:[#allocation4 + $0x360] sm:$0xff]
    %v197 = vld [vmem:[#allocation4 + $0x368] sm:$0xff]
    %v198 = vld [vmem:[#allocation4 + $0x370] sm:$0xff]
    %v199 = vld [vmem:[#allocation4 + $0x378] sm:$0xff]
    %v200 = vld [vmem:[#allocation4 + $0x380] sm:$0xff]
    %v201 = vld [vmem:[#allocation4 + $0x388] sm:$0xff]
    %v202 = vld [vmem:[#allocation4 + $0x390] sm:$0xff]
    %v203 = vld [vmem:[#allocation4 + $0x398] sm:$0xff]
    %v204 = vld [vmem:[#allocation4 + $0x3a0] sm:$0xff]
    %v205 = vld [vmem:[#allocation4 + $0x3a8] sm:$0xff]
    %v206 = vld [vmem:[#allocation4 + $0x3b0] sm:$0xff]
    %v207 = vld [vmem:[#allocation4 + $0x3b8] sm:$0xff]
    %v208 = vld [vmem:[#allocation4 + $0x3c0] sm:$0xff]
    %v209 = vld [vmem:[#allocation4 + $0x3c8] sm:$0xff]
    %v210 = vld [vmem:[#allocation4 + $0x3d0] sm:$0xff]
    %v211 = vld [vmem:[#allocation4 + $0x3d8] sm:$0xff]
    %v212 = vld [vmem:[#allocation4 + $0x3e0] sm:$0xff]
    %v213 = vld [vmem:[#allocation4 + $0x3e8] sm:$0xff]
    %v214 = vld [vmem:[#allocation4 + $0x3f0] sm:$0xff]
    %v215 = vld [vmem:[#allocation4 + $0x3f8] sm:$0xff]
    %v216 = vld [vmem:[#allocation4 + $0x400] sm:$0xff]
    %v217 = vld [vmem:[#allocation4 + $0x408] sm:$0xff]
    %v218 = vld [vmem:[#allocation4 + $0x410] sm:$0xff]
    %v219 = vld [vmem:[#allocation4 + $0x418] sm:$0xff]
    %v220 = vld [vmem:[#allocation4 + $0x420] sm:$0xff]
    %v221 = vld [vmem:[#allocation4 + $0x428] sm:$0xff]
    %v222 = vld [vmem:[#allocation4 + $0x430] sm:$0xff]
    %v223 = vld [vmem:[#allocation4 + $0x438] sm:$0xff]
    %v224 = vld [vmem:[#allocation4 + $0x440] sm:$0xff]
    %v225 = vld [vmem:[#allocation4 + $0x448] sm:$0xff]
    %v226 = vld [vmem:[#allocation4 + $0x450] sm:$0xff]
    %v227 = vld [vmem:[#allocation4 + $0x458] sm:$0xff]
    %v228 = vld [vmem:[#allocation4 + $0x460] sm:$0xff]
    %v229 = vld [vmem:[#allocation4 + $0x468] sm:$0xff]
    %v230 = vld [vmem:[#allocation4 + $0x470] sm:$0xff]
    %v231 = vld [vmem:[#allocation4 + $0x478] sm:$0xff]
    %v232 = vld [vmem:[#allocation4 + $0x480] sm:$0xff]
    %v233 = vld [vmem:[#allocation4 + $0x488] sm:$0xff]
    %v234 = vld [vmem:[#allocation4 + $0x490] sm:$0xff]
    %v235 = vld [vmem:[#allocation4 + $0x498] sm:$0xff]
    %v236 = vld [vmem:[#allocation4 + $0x4a0] sm:$0xff]
    %v237 = vld [vmem:[#allocation4 + $0x4a8] sm:$0xff]
    %v238 = vld [vmem:[#allocation4 + $0x4b0] sm:$0xff]
    %v239 = vld [vmem:[#allocation4 + $0x4b8] sm:$0xff]
    %v240 = vld [vmem:[#allocation4 + $0x4c0] sm:$0xff]
    %v241 = vld [vmem:[#allocation4 + $0x4c8] sm:$0xff]
    %v242 = vld [vmem:[#allocation4 + $0x4d0] sm:$0xff]
    %v243 = vld [vmem:[#allocation4 + $0x4d8] sm:$0xff]
    %v244 = vld [vmem:[#allocation4 + $0x4e0] sm:$0xff]
    %v245 = vld [vmem:[#allocation4 + $0x4e8] sm:$0xff]
    %v246 = vld [vmem:[#allocation4 + $0x4f0] sm:$0xff]
    %v247 = vld [vmem:[#allocation4 + $0x4f8] sm:$0xff]
    %v248 = vld [vmem:[#allocation4 + $0x500] sm:$0xff]
    %v249 = vld [vmem:[#allocation4 + $0x508] sm:$0xff]
    %v250 = vld [vmem:[#allocation4 + $0x510] sm:$0xff]
    %v251 = vld [vmem:[#allocation4 + $0x518] sm:$0xff]
    %v252 = vld [vmem:[#allocation4 + $0x520] sm:$0xff]
    %v253 = vld [vmem:[#allocation4 + $0x528] sm:$0xff]
    %v254 = vld [vmem:[#allocation4 + $0x530] sm:$0xff]
    %v255 = vld [vmem:[#allocation4 + $0x538] sm:$0xff]
    %v256 = vld [vmem:[#allocation4 + $0x540] sm:$0xff]
    %v257 = vld [vmem:[#allocation4 + $0x548] sm:$0xff]
    %v258 = vld [vmem:[#allocation4 + $0x550] sm:$0xff]
    %v259 = vld [vmem:[#allocation4 + $0x558] sm:$0xff]
    %v260 = vld [vmem:[#allocation4 + $0x560] sm:$0xff]
    %v261 = vld [vmem:[#allocation4 + $0x568] sm:$0xff]
    %v262 = vld [vmem:[#allocation4 + $0x570] sm:$0xff]
    %v263 = vld [vmem:[#allocation4 + $0x578] sm:$0xff]
    %v264 = vld [vmem:[#allocation4 + $0x580] sm:$0xff]
    %v265 = vld [vmem:[#allocation4 + $0x588] sm:$0xff]
    %v266 = vld [vmem:[#allocation4 + $0x590] sm:$0xff]
    %v267 = vld [vmem:[#allocation4 + $0x598] sm:$0xff]
    %v268 = vld [vmem:[#allocation4 + $0x5a0] sm:$0xff]
    %v269 = vld [vmem:[#allocation4 + $0x5a8] sm:$0xff]
    %v270 = vld [vmem:[#allocation4 + $0x5b0] sm:$0xff]
    %v271 = vld [vmem:[#allocation4 + $0x5b8] sm:$0xff]
    %v272 = vld [vmem:[#allocation4 + $0x5c0] sm:$0xff]
    %v273 = vld [vmem:[#allocation4 + $0x5c8] sm:$0xff]
    %v274 = vld [vmem:[#allocation4 + $0x5d0] sm:$0xff]
    %v275 = vld [vmem:[#allocation4 + $0x5d8] sm:$0xff]
    %v276 = vld [vmem:[#allocation4 + $0x5e0] sm:$0xff]
    %v277 = vld [vmem:[#allocation4 + $0x5e8] sm:$0xff]
    %v278 = vld [vmem:[#allocation4 + $0x5f0] sm:$0xff]
    %v279 = vld [vmem:[#allocation4 + $0x5f8] sm:$0xff]
    %v280 = vld [vmem:[#allocation4 + $0x600] sm:$0xff]
    %v281 = vld [vmem:[#allocation4 + $0x608] sm:$0xff]
    %v282 = vld [vmem:[#allocation4 + $0x610] sm:$0xff]
    %v283 = vld [vmem:[#allocation4 + $0x618] sm:$0xff]
    %v284 = vld [vmem:[#allocation4 + $0x620] sm:$0xff]
    %v285 = vld [vmem:[#allocation4 + $0x628] sm:$0xff]
    %v286 = vld [vmem:[#allocation4 + $0x630] sm:$0xff]
    %v287 = vld [vmem:[#allocation4 + $0x638] sm:$0xff]
    %v288 = vld [vmem:[#allocation4 + $0x640] sm:$0xff]
    %v289 = vld [vmem:[#allocation4 + $0x648] sm:$0xff]
    %v290 = vld [vmem:[#allocation4 + $0x650] sm:$0xff]
    %v291 = vld [vmem:[#allocation4 + $0x658] sm:$0xff]
    %v292 = vld [vmem:[#allocation4 + $0x660] sm:$0xff]
    %v293 = vld [vmem:[#allocation4 + $0x668] sm:$0xff]
    %v294 = vld [vmem:[#allocation4 + $0x670] sm:$0xff]
    %v295 = vld [vmem:[#allocation4 + $0x678] sm:$0xff]
    %v296 = vld [vmem:[#allocation4 + $0x680] sm:$0xff]
    %v297 = vld [vmem:[#allocation4 + $0x688] sm:$0xff]
    %v298 = vld [vmem:[#allocation4 + $0x690] sm:$0xff]
    %v299 = vld [vmem:[#allocation4 + $0x698] sm:$0xff]
    %v300 = vld [vmem:[#allocation4 + $0x6a0] sm:$0xff]
    %v301 = vld [vmem:[#allocation4 + $0x6a8] sm:$0xff]
    %v302 = vld [vmem:[#allocation4 + $0x6b0] sm:$0xff]
    %v303 = vld [vmem:[#allocation4 + $0x6b8] sm:$0xff]
    %v304 = vld [vmem:[#allocation4 + $0x6c0] sm:$0xff]
    %v305 = vld [vmem:[#allocation4 + $0x6c8] sm:$0xff]
    %v306 = vld [vmem:[#allocation4 + $0x6d0] sm:$0xff]
    %v307 = vld [vmem:[#allocation4 + $0x6d8] sm:$0xff]
    %v308 = vld [vmem:[#allocation4 + $0x6e0] sm:$0xff]
    %v309 = vld [vmem:[#allocation4 + $0x6e8] sm:$0xff]
    %v310 = vld [vmem:[#allocation4 + $0x6f0] sm:$0xff]
    %v311 = vld [vmem:[#allocation4 + $0x6f8] sm:$0xff]
    %v312 = vld [vmem:[#allocation4 + $0x700] sm:$0xff]
    %v313 = vld [vmem:[#allocation4 + $0x708] sm:$0xff]
    %v314 = vld [vmem:[#allocation4 + $0x710] sm:$0xff]
    %v315 = vld [vmem:[#allocation4 + $0x718] sm:$0xff]
    %v316 = vld [vmem:[#allocation4 + $0x720] sm:$0xff]
    %v317 = vld [vmem:[#allocation4 + $0x728] sm:$0xff]
    %v318 = vld [vmem:[#allocation4 + $0x730] sm:$0xff]
    %v319 = vld [vmem:[#allocation4 + $0x738] sm:$0xff]
    %v320 = vld [vmem:[#allocation4 + $0x740] sm:$0xff]
    %v321 = vld [vmem:[#allocation4 + $0x748] sm:$0xff]
    %v322 = vld [vmem:[#allocation4 + $0x750] sm:$0xff]
    %v323 = vld [vmem:[#allocation4 + $0x758] sm:$0xff]
    %v324 = vld [vmem:[#allocation4 + $0x760] sm:$0xff]
    %v325 = vld [vmem:[#allocation4 + $0x768] sm:$0xff]
    %v326 = vld [vmem:[#allocation4 + $0x770] sm:$0xff]
    %v327 = vld [vmem:[#allocation4 + $0x778] sm:$0xff]
    %v328 = vld [vmem:[#allocation4 + $0x780] sm:$0xff]
    %v329 = vld [vmem:[#allocation4 + $0x788] sm:$0xff]
    %v330 = vld [vmem:[#allocation4 + $0x790] sm:$0xff]
    %v331 = vld [vmem:[#allocation4 + $0x798] sm:$0xff]
    %v332 = vld [vmem:[#allocation4 + $0x7a0] sm:$0xff]
    %v333 = vld [vmem:[#allocation4 + $0x7a8] sm:$0xff]
    %v334 = vld [vmem:[#allocation4 + $0x7b0] sm:$0xff]
    %v335 = vld [vmem:[#allocation4 + $0x7b8] sm:$0xff]
    %v336 = vld [vmem:[#allocation4 + $0x7c0] sm:$0xff]
    %v337 = vld [vmem:[#allocation4 + $0x7c8] sm:$0xff]
    %v338 = vld [vmem:[#allocation4 + $0x7d0] sm:$0xff]
    %v339 = vld [vmem:[#allocation4 + $0x7d8] sm:$0xff]
    %v340 = vld [vmem:[#allocation4 + $0x7e0] sm:$0xff]
    %v341 = vld [vmem:[#allocation4 + $0x7e8] sm:$0xff]
    %v342 = vld [vmem:[#allocation4 + $0x7f0] sm:$0xff]
    %v343 = vld [vmem:[#allocation4 + $0x7f8] sm:$0xff]
    %v344 = vld [vmem:[#allocation4 + $0x800] sm:$0xff]
    %v345 = vld [vmem:[#allocation4 + $0x808] sm:$0xff]
    %v346 = vld [vmem:[#allocation4 + $0x810] sm:$0xff]
    %v347 = vld [vmem:[#allocation4 + $0x818] sm:$0xff]
    %v348 = vld [vmem:[#allocation4 + $0x820] sm:$0xff]
    %v349 = vld [vmem:[#allocation4 + $0x828] sm:$0xff]
    %v350 = vld [vmem:[#allocation4 + $0x830] sm:$0xff]
    %v351 = vld [vmem:[#allocation4 + $0x838] sm:$0xff]
    %v352 = vld [vmem:[#allocation4 + $0x840] sm:$0xff]
    %v353 = vld [vmem:[#allocation4 + $0x848] sm:$0xff]
    %v354 = vld [vmem:[#allocation4 + $0x850] sm:$0xff]
    %v355 = vld [vmem:[#allocation4 + $0x858] sm:$0xff]
    %v356 = vld [vmem:[#allocation4 + $0x860] sm:$0xff]
    %v357 = vld [vmem:[#allocation4 + $0x868] sm:$0xff]
    %v358 = vld [vmem:[#allocation4 + $0x870] sm:$0xff]
    %v359 = vld [vmem:[#allocation4 + $0x878] sm:$0xff]
    %v360 = vld [vmem:[#allocation4 + $0x880] sm:$0xff]
    %v361 = vld [vmem:[#allocation4 + $0x888] sm:$0xff]
    %v362 = vld [vmem:[#allocation4 + $0x890] sm:$0xff]
    %v363 = vld [vmem:[#allocation4 + $0x898] sm:$0xff]
    %v364 = vld [vmem:[#allocation4 + $0x8a0] sm:$0xff]
    %v365 = vld [vmem:[#allocation4 + $0x8a8] sm:$0xff]
    %v366 = vld [vmem:[#allocation4 + $0x8b0] sm:$0xff]
    %v367 = vld [vmem:[#allocation4 + $0x8b8] sm:$0xff]
    %v368 = vld [vmem:[#allocation4 + $0x8c0] sm:$0xff]
    %v369 = vld [vmem:[#allocation4 + $0x8c8] sm:$0xff]
    %v370 = vld [vmem:[#allocation4 + $0x8d0] sm:$0xff]
    %v371 = vld [vmem:[#allocation4 + $0x8d8] sm:$0xff]
    %v372 = vld [vmem:[#allocation4 + $0x8e0] sm:$0xff]
    %v373 = vld [vmem:[#allocation4 + $0x8e8] sm:$0xff]
    %v374 = vld [vmem:[#allocation4 + $0x8f0] sm:$0xff]
    %v375 = vld [vmem:[#allocation4 + $0x8f8] sm:$0xff]
    %v376 = vld [vmem:[#allocation4 + $0x900] sm:$0xff]
    %v377 = vld [vmem:[#allocation4 + $0x908] sm:$0xff]
    %v378 = vld [vmem:[#allocation4 + $0x910] sm:$0xff]
    %v379 = vld [vmem:[#allocation4 + $0x918] sm:$0xff]
    %v380 = vld [vmem:[#allocation6] sm:$0xff]
    %v381 = vld [vmem:[#allocation6 + $0x8] sm:$0xff]
    %v382 = vld [vmem:[#allocation6 + $0x10] sm:$0xff]
    %v383 = vld [vmem:[#allocation6 + $0x18] sm:$0xff]
    %v384 = vld [vmem:[#allocation6 + $0x20] sm:$0xff]
    %v385 = vld [vmem:[#allocation6 + $0x28] sm:$0xff]
    %v386 = vld [vmem:[#allocation6 + $0x30] sm:$0xff]
    %v387 = vld [vmem:[#allocation6 + $0x38] sm:$0xff]
    %v388 = vld [vmem:[#allocation6 + $0x40] sm:$0xff]
    %v389 = vld [vmem:[#allocation6 + $0x48] sm:$0xff]
    %v390 = vld [vmem:[#allocation6 + $0x50] sm:$0xff]
    %v391 = vld [vmem:[#allocation6 + $0x58] sm:$0xff]
    %v392 = vld [vmem:[#allocation6 + $0x60] sm:$0xff]
    %v393 = vld [vmem:[#allocation6 + $0x68] sm:$0xff]
    %v394 = vld [vmem:[#allocation6 + $0x70] sm:$0xff]
    %v395 = vld [vmem:[#allocation6 + $0x78] sm:$0xff]
    %v396 = vld [vmem:[#allocation6 + $0x80] sm:$0xff]
    %v397 = vld [vmem:[#allocation6 + $0x88] sm:$0xff]
    %v398 = vld [vmem:[#allocation6 + $0x90] sm:$0xff]
    %v399 = vld [vmem:[#allocation6 + $0x98] sm:$0xff]
    %v400 = vld [vmem:[#allocation6 + $0xa0] sm:$0xff]
    %v401 = vld [vmem:[#allocation6 + $0xa8] sm:$0xff]
    %v402 = vld [vmem:[#allocation6 + $0xb0] sm:$0xff]
    %v403 = vld [vmem:[#allocation6 + $0xb8] sm:$0xff]
    %v404 = vld [vmem:[#allocation6 + $0xc0] sm:$0xff]
    %v405 = vld [vmem:[#allocation6 + $0xc8] sm:$0xff]
    %v406 = vld [vmem:[#allocation6 + $0xd0] sm:$0xff]
    %v407 = vld [vmem:[#allocation6 + $0xd8] sm:$0xff]
    %v408 = vld [vmem:[#allocation6 + $0xe0] sm:$0xff]
    %v409 = vld [vmem:[#allocation6 + $0xe8] sm:$0xff]
    %v410 = vld [vmem:[#allocation6 + $0xf0] sm:$0xff]
    %v411 = vld [vmem:[#allocation6 + $0xf8] sm:$0xff]
    %v412 = vld [vmem:[#allocation6 + $0x100] sm:$0xff]
    %v413 = vld [vmem:[#allocation6 + $0x108] sm:$0xff]
    %v414 = vld [vmem:[#allocation6 + $0x110] sm:$0xff]
    %v415 = vld [vmem:[#allocation6 + $0x118] sm:$0xff]
    %v416 = vld [vmem:[#allocation6 + $0x120] sm:$0xff]
    %v417 = vld [vmem:[#allocation6 + $0x128] sm:$0xff]
    %v418 = vld [vmem:[#allocation6 + $0x130] sm:$0xff]
    %v419 = vld [vmem:[#allocation6 + $0x138] sm:$0xff]
    %v420 = vld [vmem:[#allocation6 + $0x140] sm:$0xff]
    %v421 = vld [vmem:[#allocation6 + $0x148] sm:$0xff]
    %v422 = vld [vmem:[#allocation6 + $0x150] sm:$0xff]
    %v423 = vld [vmem:[#allocation6 + $0x158] sm:$0xff]
    %v424 = vld [vmem:[#allocation6 + $0x160] sm:$0xff]
    %v425 = vld [vmem:[#allocation6 + $0x168] sm:$0xff]
    %v426 = vld [vmem:[#allocation6 + $0x170] sm:$0xff]
    %v427 = vld [vmem:[#allocation6 + $0x178] sm:$0xff]
    %v428 = vld [vmem:[#allocation6 + $0x180] sm:$0xff]
    %v429 = vld [vmem:[#allocation6 + $0x188] sm:$0xff]
    %v430 = vld [vmem:[#allocation6 + $0x190] sm:$0xff]
    %v431 = vld [vmem:[#allocation6 + $0x198] sm:$0xff]
    %v432 = vld [vmem:[#allocation6 + $0x1a0] sm:$0xff]
    %v433 = vld [vmem:[#allocation6 + $0x1a8] sm:$0xff]
    %v434 = vld [vmem:[#allocation6 + $0x1b0] sm:$0xff]
    %v435 = vld [vmem:[#allocation6 + $0x1b8] sm:$0xff]
    %v436 = vld [vmem:[#allocation6 + $0x1c0] sm:$0xff]
    %v437 = vld [vmem:[#allocation6 + $0x1c8] sm:$0xff]
    %v438 = vld [vmem:[#allocation6 + $0x1d0] sm:$0xff]
    %v439 = vld [vmem:[#allocation6 + $0x1d8] sm:$0xff]
    %v440 = vld [vmem:[#allocation6 + $0x1e0] sm:$0xff]
    %v441 = vld [vmem:[#allocation6 + $0x1e8] sm:$0xff]
    %v442 = vld [vmem:[#allocation6 + $0x1f0] sm:$0xff]
    %v443 = vld [vmem:[#allocation6 + $0x1f8] sm:$0xff]
    %v444 = vld [vmem:[#allocation6 + $0x200] sm:$0xff]
    %v445 = vld [vmem:[#allocation6 + $0x208] sm:$0xff]
    %v446 = vld [vmem:[#allocation6 + $0x210] sm:$0xff]
    %v447 = vld [vmem:[#allocation6 + $0x218] sm:$0xff]
    %v448 = vld [vmem:[#allocation6 + $0x220] sm:$0xff]
    %v449 = vld [vmem:[#allocation6 + $0x228] sm:$0xff]
    %v450 = vld [vmem:[#allocation6 + $0x230] sm:$0xff]
    %v451 = vld [vmem:[#allocation6 + $0x238] sm:$0xff]
    %v452 = vld [vmem:[#allocation6 + $0x240] sm:$0xff]
    %v453 = vld [vmem:[#allocation6 + $0x248] sm:$0xff]
    %v454 = vld [vmem:[#allocation6 + $0x250] sm:$0xff]
    %v455 = vld [vmem:[#allocation6 + $0x258] sm:$0xff]
    %v456 = vld [vmem:[#allocation6 + $0x260] sm:$0xff]
    %v457 = vld [vmem:[#allocation6 + $0x268] sm:$0xff]
    %v458 = vld [vmem:[#allocation6 + $0x270] sm:$0xff]
    %v459 = vld [vmem:[#allocation6 + $0x278] sm:$0xff]
    %v460 = vld [vmem:[#allocation6 + $0x280] sm:$0xff]
    %v461 = vld [vmem:[#allocation6 + $0x288] sm:$0xff]
    %v462 = vld [vmem:[#allocation6 + $0x290] sm:$0xff]
    %v463 = vld [vmem:[#allocation6 + $0x298] sm:$0xff]
    %v464 = vld [vmem:[#allocation6 + $0x2a0] sm:$0xff]
    %v465 = vld [vmem:[#allocation6 + $0x2a8] sm:$0xff]
    %v466 = vld [vmem:[#allocation6 + $0x2b0] sm:$0xff]
    %v467 = vld [vmem:[#allocation6 + $0x2b8] sm:$0xff]
    %v468 = vld [vmem:[#allocation6 + $0x2c0] sm:$0xff]
    %v469 = vld [vmem:[#allocation6 + $0x2c8] sm:$0xff]
    %v470 = vld [vmem:[#allocation6 + $0x2d0] sm:$0xff]
    %v471 = vld [vmem:[#allocation6 + $0x2d8] sm:$0xff]
    %v472 = vld [vmem:[#allocation6 + $0x2e0] sm:$0xff]
    %v473 = vld [vmem:[#allocation6 + $0x2e8] sm:$0xff]
    %v474 = vld [vmem:[#allocation6 + $0x2f0] sm:$0xff]
    %v475 = vld [vmem:[#allocation6 + $0x2f8] sm:$0xff]
    %v476 = vld [vmem:[#allocation6 + $0x300] sm:$0xff]
    %v477 = vld [vmem:[#allocation6 + $0x308] sm:$0xff]
    %v478 = vld [vmem:[#allocation6 + $0x310] sm:$0xff]
    %v479 = vld [vmem:[#allocation6 + $0x318] sm:$0xff]
    %v480 = vld [vmem:[#allocation6 + $0x320] sm:$0xff]
    %v481 = vld [vmem:[#allocation6 + $0x328] sm:$0xff]
    %v482 = vld [vmem:[#allocation6 + $0x330] sm:$0xff]
    %v483 = vld [vmem:[#allocation6 + $0x338] sm:$0xff]
    %v484 = vld [vmem:[#allocation6 + $0x340] sm:$0xff]
    %v485 = vld [vmem:[#allocation6 + $0x348] sm:$0xff]
    %v486 = vld [vmem:[#allocation6 + $0x350] sm:$0xff]
    %v487 = vld [vmem:[#allocation6 + $0x358] sm:$0xff]
    %v488 = vld [vmem:[#allocation6 + $0x360] sm:$0xff]
    %v489 = vld [vmem:[#allocation6 + $0x368] sm:$0xff]
    %v490 = vld [vmem:[#allocation6 + $0x370] sm:$0xff]
    %v491 = vld [vmem:[#allocation6 + $0x378] sm:$0xff]
    %v492 = vld [vmem:[#allocation6 + $0x380] sm:$0xff]
    %v493 = vld [vmem:[#allocation6 + $0x388] sm:$0xff]
    %v494 = vld [vmem:[#allocation6 + $0x390] sm:$0xff]
    %v495 = vld [vmem:[#allocation6 + $0x398] sm:$0xff]
    %v496 = vld [vmem:[#allocation6 + $0x3a0] sm:$0xff]
    %v497 = vld [vmem:[#allocation6 + $0x3a8] sm:$0xff]
    %v498 = vld [vmem:[#allocation6 + $0x3b0] sm:$0xff]
    %v499 = vld [vmem:[#allocation6 + $0x3b8] sm:$0xff]
    %v500 = vld [vmem:[#allocation6 + $0x3c0] sm:$0xff]
    %v501 = vld [vmem:[#allocation6 + $0x3c8] sm:$0xff]
    %v502 = vld [vmem:[#allocation6 + $0x3d0] sm:$0xff]
    %v503 = vld [vmem:[#allocation6 + $0x3d8] sm:$0xff]
    %v504 = vld [vmem:[#allocation6 + $0x3e0] sm:$0xff]
    %v505 = vld [vmem:[#allocation6 + $0x3e8] sm:$0xff]
    %v506 = vld [vmem:[#allocation6 + $0x3f0] sm:$0xff]
    %v507 = vld [vmem:[#allocation6 + $0x3f8] sm:$0xff]
    %v508 = vld [vmem:[#allocation6 + $0x400] sm:$0xff]
    %v509 = vld [vmem:[#allocation6 + $0x408] sm:$0xff]
    %v510 = vld [vmem:[#allocation6 + $0x410] sm:$0xff]
    %v511 = vld [vmem:[#allocation6 + $0x418] sm:$0xff]
    %v512 = vld [vmem:[#allocation6 + $0x420] sm:$0xff]
    %v513 = vld [vmem:[#allocation6 + $0x428] sm:$0xff]
    %v514 = vld [vmem:[#allocation6 + $0x430] sm:$0xff]
    %v515 = vld [vmem:[#allocation6 + $0x438] sm:$0xff]
    %v516 = vld [vmem:[#allocation6 + $0x440] sm:$0xff]
    %v517 = vld [vmem:[#allocation6 + $0x448] sm:$0xff]
    %v518 = vld [vmem:[#allocation6 + $0x450] sm:$0xff]
    %v519 = vld [vmem:[#allocation6 + $0x458] sm:$0xff]
    %v520 = vld [vmem:[#allocation6 + $0x460] sm:$0xff]
    %v521 = vld [vmem:[#allocation6 + $0x468] sm:$0xff]
    %v522 = vld [vmem:[#allocation6 + $0x470] sm:$0xff]
    %v523 = vld [vmem:[#allocation6 + $0x478] sm:$0xff]
    %v524 = vld [vmem:[#allocation6 + $0x480] sm:$0xff]
    %v525 = vld [vmem:[#allocation6 + $0x488] sm:$0xff]
    %v526 = vld [vmem:[#allocation6 + $0x490] sm:$0xff]
    %v527 = vld [vmem:[#allocation6 + $0x498] sm:$0xff]
    %v528 = vld [vmem:[#allocation6 + $0x4a0] sm:$0xff]
    %v529 = vld [vmem:[#allocation6 + $0x4a8] sm:$0xff]
    %v530 = vld [vmem:[#allocation6 + $0x4b0] sm:$0xff]
    %v531 = vld [vmem:[#allocation6 + $0x4b8] sm:$0xff]
    %v532 = vld [vmem:[#allocation6 + $0x4c0] sm:$0xff]
    %v533 = vld [vmem:[#allocation6 + $0x4c8] sm:$0xff]
    %v534 = vld [vmem:[#allocation6 + $0x4d0] sm:$0xff]
    %v535 = vld [vmem:[#allocation6 + $0x4d8] sm:$0xff]
    %v536 = vld [vmem:[#allocation6 + $0x4e0] sm:$0xff]
    %v537 = vld [vmem:[#allocation6 + $0x4e8] sm:$0xff]
    %v538 = vld [vmem:[#allocation6 + $0x4f0] sm:$0xff]
    %v539 = vld [vmem:[#allocation6 + $0x4f8] sm:$0xff]
    %v540 = vld [vmem:[#allocation6 + $0x500] sm:$0xff]
    %v541 = vld [vmem:[#allocation6 + $0x508] sm:$0xff]
    %v542 = vld [vmem:[#allocation6 + $0x510] sm:$0xff]
    %v543 = vld [vmem:[#allocation6 + $0x518] sm:$0xff]
    %v544 = vld [vmem:[#allocation6 + $0x520] sm:$0xff]
    %v545 = vld [vmem:[#allocation6 + $0x528] sm:$0xff]
    %v546 = vld [vmem:[#allocation6 + $0x530] sm:$0xff]
    %v547 = vld [vmem:[#allocation6 + $0x538] sm:$0xff]
    %v548 = vld [vmem:[#allocation6 + $0x540] sm:$0xff]
    %v549 = vld [vmem:[#allocation6 + $0x548] sm:$0xff]
    %v550 = vld [vmem:[#allocation6 + $0x550] sm:$0xff]
    %v551 = vld [vmem:[#allocation6 + $0x558] sm:$0xff]
    %v552 = vld [vmem:[#allocation6 + $0x560] sm:$0xff]
    %v553 = vld [vmem:[#allocation6 + $0x568] sm:$0xff]
    %v554 = vld [vmem:[#allocation6 + $0x570] sm:$0xff]
    %v555 = vld [vmem:[#allocation6 + $0x578] sm:$0xff]
    %v556 = vld [vmem:[#allocation6 + $0x580] sm:$0xff]
    %v557 = vld [vmem:[#allocation6 + $0x588] sm:$0xff]
    %v558 = vld [vmem:[#allocation6 + $0x590] sm:$0xff]
    %v559 = vld [vmem:[#allocation6 + $0x598] sm:$0xff]
    %v560 = vld [vmem:[#allocation6 + $0x5a0] sm:$0xff]
    %v561 = vld [vmem:[#allocation6 + $0x5a8] sm:$0xff]
    %v562 = vld [vmem:[#allocation6 + $0x5b0] sm:$0xff]
    %v563 = vld [vmem:[#allocation6 + $0x5b8] sm:$0xff]
    %v564 = vld [vmem:[#allocation6 + $0x5c0] sm:$0xff]
    %v565 = vld [vmem:[#allocation6 + $0x5c8] sm:$0xff]
    %v566 = vld [vmem:[#allocation6 + $0x5d0] sm:$0xff]
    %v567 = vld [vmem:[#allocation6 + $0x5d8] sm:$0xff]
    %v568 = vld [vmem:[#allocation6 + $0x5e0] sm:$0xff]
    %v569 = vld [vmem:[#allocation6 + $0x5e8] sm:$0xff]
    %v570 = vld [vmem:[#allocation6 + $0x5f0] sm:$0xff]
    %v571 = vld [vmem:[#allocation6 + $0x5f8] sm:$0xff]
    %v572 = vld [vmem:[#allocation6 + $0x600] sm:$0xff]
    %v573 = vld [vmem:[#allocation6 + $0x608] sm:$0xff]
    %v574 = vld [vmem:[#allocation6 + $0x610] sm:$0xff]
    %v575 = vld [vmem:[#allocation6 + $0x618] sm:$0xff]
    %v576 = vld [vmem:[#allocation6 + $0x620] sm:$0xff]
    %v577 = vld [vmem:[#allocation6 + $0x628] sm:$0xff]
    %v578 = vld [vmem:[#allocation6 + $0x630] sm:$0xff]
    %v579 = vld [vmem:[#allocation6 + $0x638] sm:$0xff]
    %v580 = vld [vmem:[#allocation6 + $0x640] sm:$0xff]
    %v581 = vld [vmem:[#allocation6 + $0x648] sm:$0xff]
    %v582 = vld [vmem:[#allocation6 + $0x650] sm:$0xff]
    %v583 = vld [vmem:[#allocation6 + $0x658] sm:$0xff]
    %v584 = vld [vmem:[#allocation6 + $0x660] sm:$0xff]
    %v585 = vld [vmem:[#allocation6 + $0x668] sm:$0xff]
    %v586 = vld [vmem:[#allocation6 + $0x670] sm:$0xff]
    %v587 = vld [vmem:[#allocation6 + $0x678] sm:$0xff]
    %v588 = vld [vmem:[#allocation6 + $0x680] sm:$0xff]
    %v589 = vld [vmem:[#allocation6 + $0x688] sm:$0xff]
    %v590 = vld [vmem:[#allocation6 + $0x690] sm:$0xff]
    %v591 = vld [vmem:[#allocation6 + $0x698] sm:$0xff]
    %v592 = vld [vmem:[#allocation6 + $0x6a0] sm:$0xff]
    %v593 = vld [vmem:[#allocation6 + $0x6a8] sm:$0xff]
    %v594 = vld [vmem:[#allocation6 + $0x6b0] sm:$0xff]
    %v595 = vld [vmem:[#allocation6 + $0x6b8] sm:$0xff]
    %v596 = vld [vmem:[#allocation6 + $0x6c0] sm:$0xff]
    %v597 = vld [vmem:[#allocation6 + $0x6c8] sm:$0xff]
    %v598 = vld [vmem:[#allocation6 + $0x6d0] sm:$0xff]
    %v599 = vld [vmem:[#allocation6 + $0x6d8] sm:$0xff]
    %v600 = vld [vmem:[#allocation6 + $0x6e0] sm:$0xff]
    %v601 = vld [vmem:[#allocation6 + $0x6e8] sm:$0xff]
    %v602 = vld [vmem:[#allocation6 + $0x6f0] sm:$0xff]
    %v603 = vld [vmem:[#allocation6 + $0x6f8] sm:$0xff]
    %v604 = vld [vmem:[#allocation6 + $0x700] sm:$0xff]
    %v605 = vld [vmem:[#allocation6 + $0x708] sm:$0xff]
    %v606 = vld [vmem:[#allocation6 + $0x710] sm:$0xff]
    %v607 = vld [vmem:[#allocation6 + $0x718] sm:$0xff]
    %v608 = vld [vmem:[#allocation6 + $0x720] sm:$0xff]
    %v609 = vld [vmem:[#allocation6 + $0x728] sm:$0xff]
    %v610 = vld [vmem:[#allocation6 + $0x730] sm:$0xff]
    %v611 = vld [vmem:[#allocation6 + $0x738] sm:$0xff]
    %v612 = vld [vmem:[#allocation6 + $0x740] sm:$0xff]
    %v613 = vld [vmem:[#allocation6 + $0x748] sm:$0xff]
    %v614 = vld [vmem:[#allocation6 + $0x750] sm:$0xff]
    %v615 = vld [vmem:[#allocation6 + $0x758] sm:$0xff]
    %v616 = vld [vmem:[#allocation6 + $0x760] sm:$0xff]
    %v617 = vld [vmem:[#allocation6 + $0x768] sm:$0xff]
    %v618 = vld [vmem:[#allocation6 + $0x770] sm:$0xff]
    %v619 = vld [vmem:[#allocation6 + $0x778] sm:$0xff]
    %v620 = vld [vmem:[#allocation6 + $0x780] sm:$0xff]
    %v621 = vld [vmem:[#allocation6 + $0x788] sm:$0xff]
    %v622 = vld [vmem:[#allocation6 + $0x790] sm:$0xff]
    %v623 = vld [vmem:[#allocation6 + $0x798] sm:$0xff]
    %v624 = vld [vmem:[#allocation6 + $0x7a0] sm:$0xff]
    %v625 = vld [vmem:[#allocation6 + $0x7a8] sm:$0xff]
    %v626 = vld [vmem:[#allocation6 + $0x7b0] sm:$0xff]
    %v627 = vld [vmem:[#allocation6 + $0x7b8] sm:$0xff]
    %v628 = vld [vmem:[#allocation6 + $0x7c0] sm:$0xff]
    %v629 = vld [vmem:[#allocation6 + $0x7c8] sm:$0xff]
    %v630 = vld [vmem:[#allocation6 + $0x7d0] sm:$0xff]
    %v631 = vld [vmem:[#allocation6 + $0x7d8] sm:$0xff]
    %v632 = vld [vmem:[#allocation6 + $0x7e0] sm:$0xff]
    %v633 = vld [vmem:[#allocation6 + $0x7e8] sm:$0xff]
    %v634 = vld [vmem:[#allocation6 + $0x7f0] sm:$0xff]
    %v635 = vld [vmem:[#allocation6 + $0x7f8] sm:$0xff]
    %v636 = vld [vmem:[#allocation6 + $0x800] sm:$0xff]
    %v637 = vld [vmem:[#allocation6 + $0x808] sm:$0xff]
    %v638 = vld [vmem:[#allocation6 + $0x810] sm:$0xff]
    %v639 = vld [vmem:[#allocation6 + $0x818] sm:$0xff]
    %v640 = vld [vmem:[#allocation6 + $0x820] sm:$0xff]
    %v641 = vld [vmem:[#allocation6 + $0x828] sm:$0xff]
    %v642 = vld [vmem:[#allocation6 + $0x830] sm:$0xff]
    %v643 = vld [vmem:[#allocation6 + $0x838] sm:$0xff]
    %v644 = vld [vmem:[#allocation6 + $0x840] sm:$0xff]
    %v645 = vld [vmem:[#allocation6 + $0x848] sm:$0xff]
    %v646 = vld [vmem:[#allocation6 + $0x850] sm:$0xff]
    %v647 = vld [vmem:[#allocation6 + $0x858] sm:$0xff]
    %v648 = vld [vmem:[#allocation6 + $0x860] sm:$0xff]
    %v649 = vld [vmem:[#allocation6 + $0x868] sm:$0xff]
    %v650 = vld [vmem:[#allocation6 + $0x870] sm:$0xff]
    %v651 = vld [vmem:[#allocation6 + $0x878] sm:$0xff]
    %v652 = vld [vmem:[#allocation6 + $0x880] sm:$0xff]
    %v653 = vld [vmem:[#allocation6 + $0x888] sm:$0xff]
    %v654 = vld [vmem:[#allocation6 + $0x890] sm:$0xff]
    %v655 = vld [vmem:[#allocation6 + $0x898] sm:$0xff]
    %v656 = vld [vmem:[#allocation6 + $0x8a0] sm:$0xff]
    %v657 = vld [vmem:[#allocation6 + $0x8a8] sm:$0xff]
    %v658 = vld [vmem:[#allocation6 + $0x8b0] sm:$0xff]
    %v659 = vld [vmem:[#allocation6 + $0x8b8] sm:$0xff]
    %v660 = vld [vmem:[#allocation6 + $0x8c0] sm:$0xff]
    %v661 = vld [vmem:[#allocation6 + $0x8c8] sm:$0xff]
    %v662 = vld [vmem:[#allocation6 + $0x8d0] sm:$0xff]
    %v663 = vld [vmem:[#allocation6 + $0x8d8] sm:$0xff]
    %v664 = vld [vmem:[#allocation6 + $0x8e0] sm:$0xff]
    %v665 = vld [vmem:[#allocation6 + $0x8e8] sm:$0xff]
    %v666 = vld [vmem:[#allocation6 + $0x8f0] sm:$0xff]
    %v667 = vld [vmem:[#allocation6 + $0x8f8] sm:$0xff]
    %v668 = vld [vmem:[#allocation6 + $0x900] sm:$0xff]
    %v669 = vld [vmem:[#allocation6 + $0x908] sm:$0xff]
    %v670 = vld [vmem:[#allocation6 + $0x910] sm:$0xff]
    %v671 = vld [vmem:[#allocation6 + $0x918] sm:$0xff]
    %v672 = vld [vmem:[#allocation6 + $0x920] sm:$0xff]
    %v673 = vld [vmem:[#allocation6 + $0x928] sm:$0xff]
    %v674 = vld [vmem:[#allocation6 + $0x930] sm:$0xff]
    %v675 = vld [vmem:[#allocation6 + $0x938] sm:$0xff]
    %v676 = vld [vmem:[#allocation6 + $0x940] sm:$0xff]
    %v677 = vld [vmem:[#allocation6 + $0x948] sm:$0xff]
    %v678 = vld [vmem:[#allocation6 + $0x950] sm:$0xff]
    %v679 = vld [vmem:[#allocation6 + $0x958] sm:$0xff]
    %v680 = vld [vmem:[#allocation6 + $0x960] sm:$0xff]
    %v681 = vld [vmem:[#allocation6 + $0x968] sm:$0xff]
    %v682 = vld [vmem:[#allocation6 + $0x970] sm:$0xff]
    %v683 = vld [vmem:[#allocation6 + $0x978] sm:$0xff]
    %v684 = vld [vmem:[#allocation6 + $0x980] sm:$0xff]
    %v685 = vld [vmem:[#allocation6 + $0x988] sm:$0xff]
    %v686 = vld [vmem:[#allocation6 + $0x990] sm:$0xff]
    %v687 = vld [vmem:[#allocation6 + $0x998] sm:$0xff]
    %v688 = vld [vmem:[#allocation6 + $0x9a0] sm:$0xff]
    %v689 = vld [vmem:[#allocation6 + $0x9a8] sm:$0xff]
    %v690 = vld [vmem:[#allocation6 + $0x9b0] sm:$0xff]
    %v691 = vld [vmem:[#allocation6 + $0x9b8] sm:$0xff]
    %v692 = vld [vmem:[#allocation6 + $0x9c0] sm:$0xff]
    %v693 = vld [vmem:[#allocation6 + $0x9c8] sm:$0xff]
    %v694 = vld [vmem:[#allocation6 + $0x9d0] sm:$0xff]
    %v695 = vld [vmem:[#allocation6 + $0x9d8] sm:$0xff]
    %v696 = vld [vmem:[#allocation6 + $0x9e0] sm:$0xff]
    %v697 = vld [vmem:[#allocation6 + $0x9e8] sm:$0xff]
    %v698 = vld [vmem:[#allocation6 + $0x9f0] sm:$0xff]
    %v699 = vld [vmem:[#allocation6 + $0x9f8] sm:$0xff]
    %v700 = vld [vmem:[#allocation6 + $0xa00] sm:$0xff]
    %v701 = vld [vmem:[#allocation6 + $0xa08] sm:$0xff]
    %v702 = vld [vmem:[#allocation6 + $0xa10] sm:$0xff]
    %v703 = vld [vmem:[#allocation6 + $0xa18] sm:$0xff]
    %v704 = vld [vmem:[#allocation6 + $0xa20] sm:$0xff]
    %v705 = vld [vmem:[#allocation6 + $0xa28] sm:$0xff]
    %v706 = vld [vmem:[#allocation6 + $0xa30] sm:$0xff]
    %v707 = vld [vmem:[#allocation6 + $0xa38] sm:$0xff]
    %v708 = vld [vmem:[#allocation6 + $0xa40] sm:$0xff]
    %v709 = vld [vmem:[#allocation6 + $0xa48] sm:$0xff]
    %v710 = vld [vmem:[#allocation6 + $0xa50] sm:$0xff]
    %v711 = vld [vmem:[#allocation6 + $0xa58] sm:$0xff]
    %v712 = vld [vmem:[#allocation6 + $0xa60] sm:$0xff]
    %v713 = vld [vmem:[#allocation6 + $0xa68] sm:$0xff]
    %v714 = vld [vmem:[#allocation6 + $0xa70] sm:$0xff]
    %v715 = vld [vmem:[#allocation6 + $0xa78] sm:$0xff]
    %v716 = vld [vmem:[#allocation6 + $0xa80] sm:$0xff]
    %v717 = vld [vmem:[#allocation6 + $0xa88] sm:$0xff]
    %v718 = vld [vmem:[#allocation6 + $0xa90] sm:$0xff]
    %v719 = vld [vmem:[#allocation6 + $0xa98] sm:$0xff]
    %v720 = vld [vmem:[#allocation6 + $0xaa0] sm:$0xff]
    %v721 = vld [vmem:[#allocation6 + $0xaa8] sm:$0xff]
    %v722 = vld [vmem:[#allocation6 + $0xab0] sm:$0xff]
    %v723 = vld [vmem:[#allocation6 + $0xab8] sm:$0xff]
    %v724 = vld [vmem:[#allocation6 + $0xac0] sm:$0xff]
    %v725 = vld [vmem:[#allocation6 + $0xac8] sm:$0xff]
    %v726 = vld [vmem:[#allocation6 + $0xad0] sm:$0xff]
    %v727 = vld [vmem:[#allocation6 + $0xad8] sm:$0xff]
    %v728 = vld [vmem:[#allocation6 + $0xae0] sm:$0xff]
    %v729 = vld [vmem:[#allocation6 + $0xae8] sm:$0xff]
    %v730 = vld [vmem:[#allocation6 + $0xaf0] sm:$0xff]
    %v731 = vld [vmem:[#allocation6 + $0xaf8] sm:$0xff]
    %v732 = vld [vmem:[#allocation6 + $0xb00] sm:$0xff]
    %v733 = vld [vmem:[#allocation6 + $0xb08] sm:$0xff]
    %v734 = vld [vmem:[#allocation6 + $0xb10] sm:$0xff]
    %v735 = vld [vmem:[#allocation6 + $0xb18] sm:$0xff]
    %v736 = vld [vmem:[#allocation6 + $0xb20] sm:$0xff]
    %v737 = vld [vmem:[#allocation6 + $0xb28] sm:$0xff]
    %v738 = vld [vmem:[#allocation6 + $0xb30] sm:$0xff]
    %v739 = vld [vmem:[#allocation6 + $0xb38] sm:$0xff]
    %v740 = vld [vmem:[#allocation6 + $0xb40] sm:$0xff]
    %v741 = vld [vmem:[#allocation6 + $0xb48] sm:$0xff]
    %v742 = vld [vmem:[#allocation6 + $0xb50] sm:$0xff]
    %v743 = vld [vmem:[#allocation6 + $0xb58] sm:$0xff]
    %v744 = vld [vmem:[#allocation6 + $0xb60] sm:$0xff]
    %v745 = vld [vmem:[#allocation6 + $0xb68] sm:$0xff]
    %v746 = vld [vmem:[#allocation6 + $0xb70] sm:$0xff]
    %v747 = vld [vmem:[#allocation6 + $0xb78] sm:$0xff]
    %v748 = vld [vmem:[#allocation6 + $0xb80] sm:$0xff]
    %v749 = vld [vmem:[#allocation6 + $0xb88] sm:$0xff]
    %v750 = vld [vmem:[#allocation6 + $0xb90] sm:$0xff]
    %v751 = vld [vmem:[#allocation6 + $0xb98] sm:$0xff]
    %v752 = vld [vmem:[#allocation6 + $0xba0] sm:$0xff]
    %v753 = vld [vmem:[#allocation6 + $0xba8] sm:$0xff]
    %v754 = vld [vmem:[#allocation6 + $0xbb0] sm:$0xff]
    %v755 = vld [vmem:[#allocation6 + $0xbb8] sm:$0xff]
    %v756 = vld [vmem:[#allocation6 + $0xbc0] sm:$0xff]
    %v757 = vld [vmem:[#allocation6 + $0xbc8] sm:$0xff]
    %v758 = vld [vmem:[#allocation6 + $0xbd0] sm:$0xff]
    %v759 = vld [vmem:[#allocation6 + $0xbd8] sm:$0xff]
    %v760 = vld [vmem:[#allocation6 + $0xbe0] sm:$0xff]
    %v761 = vld [vmem:[#allocation6 + $0xbe8] sm:$0xff]
    %v762 = vld [vmem:[#allocation6 + $0xbf0] sm:$0xff]
    %v763 = vld [vmem:[#allocation6 + $0xbf8] sm:$0xff]
    %v764 = vld [vmem:[#allocation7] ss:$8 sm:$0xf]
    %s765 = scalar_lea.vmem [#allocation7], 1
    %v766 = vld [vmem:[%s765] ss:$8 sm:$0xf]
    %s767 = scalar_lea.vmem [#allocation7], 2
    %v768 = vld [vmem:[%s767] ss:$8 sm:$0x3]
    %s769 = scalar_lea.vmem [#allocation7], 3
    %v770 = vld [vmem:[%s769] ss:$8 sm:$0x3]
    %vm771 = vcmask 64512
    %v773 = vsel %vm771, %v81, 0
    %775 = vmatpush.msra.mxu0 0.0
    %776 = vmatpush.msra.mxu0 0.0
    %777 = vmatpush.msra.mxu0 0.0
    %778 = vmatpush.msra.mxu0 0.0
    %779 = vmatpush.msra.mxu0 0.0
    %780 = vmatpush.msra.mxu0 0.0
    %781 = vmatpush.msra.mxu0 0.0
    %782 = vmatpush.msra.mxu0 0.0
    %783 = vmatpush.msra.mxu0 0.0
    %784 = vmatpush.msra.mxu0 0.0
    %785 = vmatpush.msra.mxu0 0.0
    %786 = vmatpush.msra.mxu0 0.0
    %787 = vmatpush.msra.mxu0 0.0
    %788 = vmatpush.msra.mxu0 0.0
    %789 = vmatpush.msra.mxu0 0.0
    %790 = vmatpush.msra.mxu0 %v82
    %791 = vmatmul.f32.gmra.mxu0 %v773
    %v792 = vpop.f32.mrf.mxu0
    %v793 = vadd.f32 0.0, %v792
    %794 = vdwg.mxu0
    %795 = vmatpush.msra.mxu0 0.0
    %796 = vmatpush.msra.mxu0 0.0
    %797 = vmatpush.msra.mxu0 0.0
    %798 = vmatpush.msra.mxu0 0.0
    %799 = vmatpush.msra.mxu0 0.0
    %800 = vmatpush.msra.mxu0 0.0
    %801 = vmatpush.msra.mxu0 0.0
    %802 = vmatpush.msra.mxu0 0.0
    %803 = vmatpush.msra.mxu0 0.0
    %804 = vmatpush.msra.mxu0 0.0
    %805 = vmatpush.msra.mxu0 0.0
    %806 = vmatpush.msra.mxu0 0.0
    %807 = vmatpush.msra.mxu0 0.0
    %808 = vmatpush.msra.mxu0 0.0
    %809 = vmatpush.msra.mxu0 0.0
    %810 = vmatpush.msra.mxu0 %v83
    %811 = vmatmul.f32.gmra.mxu0 %v773
    %v812 = vpop.f32.mrf.mxu0
    %v813 = vadd.f32 0.0, %v812
    %814 = vdwg.mxu0
    %815 = vmatpush.msra.mxu0 0.0
    %816 = vmatpush.msra.mxu0 0.0
    %817 = vmatpush.msra.mxu0 0.0
    %818 = vmatpush.msra.mxu0 0.0
    %819 = vmatpush.msra.mxu0 0.0
    %820 = vmatpush.msra.mxu0 0.0
    %821 = vmatpush.msra.mxu0 0.0
    %822 = vmatpush.msra.mxu0 0.0
    %823 = vmatpush.msra.mxu0 0.0
    %824 = vmatpush.msra.mxu0 0.0
    %825 = vmatpush.msra.mxu0 0.0
    %826 = vmatpush.msra.mxu0 0.0
    %827 = vmatpush.msra.mxu0 0.0
    %828 = vmatpush.msra.mxu0 0.0
    %829 = vmatpush.msra.mxu0 0.0
    %830 = vmatpush.msra.mxu0 %v84
    %831 = vmatmul.f32.gmra.mxu0 %v773
    %v832 = vpop.f32.mrf.mxu0
    %v833 = vadd.f32 0.0, %v832
    %834 = vdwg.mxu0
    %835 = vmatpush.msra.mxu0 0.0
    %836 = vmatpush.msra.mxu0 0.0
    %837 = vmatpush.msra.mxu0 0.0
    %838 = vmatpush.msra.mxu0 0.0
    %839 = vmatpush.msra.mxu0 0.0
    %840 = vmatpush.msra.mxu0 0.0
    %841 = vmatpush.msra.mxu0 0.0
    %842 = vmatpush.msra.mxu0 0.0
    %843 = vmatpush.msra.mxu0 0.0
    %844 = vmatpush.msra.mxu0 0.0
    %845 = vmatpush.msra.mxu0 0.0
    %846 = vmatpush.msra.mxu0 0.0
    %847 = vmatpush.msra.mxu0 0.0
    %848 = vmatpush.msra.mxu0 0.0
    %849 = vmatpush.msra.mxu0 0.0
    %850 = vmatpush.msra.mxu0 %v85
    %851 = vmatmul.f32.gmra.mxu0 %v773
    %v852 = vpop.f32.mrf.mxu0
    %v853 = vadd.f32 0.0, %v852
    %854 = vdwg.mxu0
    %v856 = vperm.slane %v87, 0
    %v857 = vperm.slane %v87, 1
    %v858 = vperm.slane %v87, 2
    %v859 = vperm.slane %v87, 3
    %vm864 = vcmp.eq.f32.partialorder %v793, %v856
    %vm865 = vcmp.eq.f32.partialorder %v813, %v857
    %vm866 = vcmp.eq.f32.partialorder %v833, %v858
    %vm867 = vcmp.eq.f32.partialorder %v853, %v859
    %v868 = vsel %vm864, 1.0, 0.0
    %v869 = vsel %vm865, 1.0, 0.0
    %v870 = vsel %vm866, 1.0, 0.0
    %v871 = vsel %vm867, 1.0, 0.0
    %v873 = vperm.slane %v768, 0
    %v874 = vperm.slane %v768, 1
    %vm877 = vcmask 130048
    %v879 = vsel %vm877, %v871, 0
    %881 = vmatpush.msra.mxu0 %v118
    %882 = vmatpush.msra.mxu0 %v116
    %883 = vmatpush.msra.mxu0 %v114
    %884 = vmatpush.msra.mxu0 %v112
    %885 = vmatpush.msra.mxu0 %v110
    %886 = vmatpush.msra.mxu0 %v108
    %887 = vmatpush.msra.mxu0 %v106
    %888 = vmatpush.msra.mxu0 %v104
    %889 = vmatpush.msra.mxu0 %v102
    %890 = vmatpush.msra.mxu0 %v100
    %891 = vmatpush.msra.mxu0 %v98
    %892 = vmatpush.msra.mxu0 %v96
    %893 = vmatpush.msra.mxu0 %v94
    %894 = vmatpush.msra.mxu0 %v92
    %895 = vmatpush.msra.mxu0 %v90
    %896 = vmatpush.msra.mxu0 %v88
    %897 = vmatmul.f32.gmra.mxu0 %v868
    %v898 = vpop.f32.mrf.mxu0
    %v899 = vadd.f32 %v873, %v898
    %900 = vdwg.mxu0
    %901 = vmatpush.msra.mxu0 %v150
    %902 = vmatpush.msra.mxu0 %v148
    %903 = vmatpush.msra.mxu0 %v146
    %904 = vmatpush.msra.mxu0 %v144
    %905 = vmatpush.msra.mxu0 %v142
    %906 = vmatpush.msra.mxu0 %v140
    %907 = vmatpush.msra.mxu0 %v138
    %908 = vmatpush.msra.mxu0 %v136
    %909 = vmatpush.msra.mxu0 %v134
    %910 = vmatpush.msra.mxu0 %v132
    %911 = vmatpush.msra.mxu0 %v130
    %912 = vmatpush.msra.mxu0 %v128
    %913 = vmatpush.msra.mxu0 %v126
    %914 = vmatpush.msra.mxu0 %v124
    %915 = vmatpush.msra.mxu0 %v122
    %916 = vmatpush.msra.mxu0 %v120
    %917 = vmatmul.f32.gmra.mxu0 %v869
    %v918 = vpop.f32.mrf.mxu0
    %v919 = vadd.f32 %v899, %v918
    %920 = vdwg.mxu0
    %921 = vmatpush.msra.mxu0 %v182
    %922 = vmatpush.msra.mxu0 %v180
    %923 = vmatpush.msra.mxu0 %v178
    %924 = vmatpush.msra.mxu0 %v176
    %925 = vmatpush.msra.mxu0 %v174
    %926 = vmatpush.msra.mxu0 %v172
    %927 = vmatpush.msra.mxu0 %v170
    %928 = vmatpush.msra.mxu0 %v168
    %929 = vmatpush.msra.mxu0 %v166
    %930 = vmatpush.msra.mxu0 %v164
    %931 = vmatpush.msra.mxu0 %v162
    %932 = vmatpush.msra.mxu0 %v160
    %933 = vmatpush.msra.mxu0 %v158
    %934 = vmatpush.msra.mxu0 %v156
    %935 = vmatpush.msra.mxu0 %v154
    %936 = vmatpush.msra.mxu0 %v152
    %937 = vmatmul.f32.gmra.mxu0 %v870
    %v938 = vpop.f32.mrf.mxu0
    %v939 = vadd.f32 %v919, %v938
    %940 = vdwg.mxu0
    %941 = vmatpush.msra.mxu0 0.0
    %942 = vmatpush.msra.mxu0 0.0
    %943 = vmatpush.msra.mxu0 0.0
    %944 = vmatpush.msra.mxu0 0.0
    %945 = vmatpush.msra.mxu0 0.0
    %946 = vmatpush.msra.mxu0 0.0
    %947 = vmatpush.msra.mxu0 0.0
    %948 = vmatpush.msra.mxu0 0.0
    %949 = vmatpush.msra.mxu0 0.0
    %950 = vmatpush.msra.mxu0 0.0
    %951 = vmatpush.msra.mxu0 0.0
    %952 = vmatpush.msra.mxu0 0.0
    %953 = vmatpush.msra.mxu0 0.0
    %954 = vmatpush.msra.mxu0 0.0
    %955 = vmatpush.msra.mxu0 %v186
    %956 = vmatpush.msra.mxu0 %v184
    %957 = vmatmul.f32.gmra.mxu0 %v879
    %v958 = vpop.f32.mrf.mxu0
    %v959 = vadd.f32 %v939, %v958
    %960 = vdwg.mxu0
    %961 = vmatpush.msra.mxu0 %v119
    %962 = vmatpush.msra.mxu0 %v117
    %963 = vmatpush.msra.mxu0 %v115
    %964 = vmatpush.msra.mxu0 %v113
    %965 = vmatpush.msra.mxu0 %v111
    %966 = vmatpush.msra.mxu0 %v109
    %967 = vmatpush.msra.mxu0 %v107
    %968 = vmatpush.msra.mxu0 %v105
    %969 = vmatpush.msra.mxu0 %v103
    %970 = vmatpush.msra.mxu0 %v101
    %971 = vmatpush.msra.mxu0 %v99
    %972 = vmatpush.msra.mxu0 %v97
    %973 = vmatpush.msra.mxu0 %v95
    %974 = vmatpush.msra.mxu0 %v93
    %975 = vmatpush.msra.mxu0 %v91
    %976 = vmatpush.msra.mxu0 %v89
    %977 = vmatmul.f32.gmra.mxu0 %v868
    %v978 = vpop.f32.mrf.mxu0
    %v979 = vadd.f32 %v874, %v978
    %980 = vdwg.mxu0
    %981 = vmatpush.msra.mxu0 %v151
    %982 = vmatpush.msra.mxu0 %v149
    %983 = vmatpush.msra.mxu0 %v147
    %984 = vmatpush.msra.mxu0 %v145
    %985 = vmatpush.msra.mxu0 %v143
    %986 = vmatpush.msra.mxu0 %v141
    %987 = vmatpush.msra.mxu0 %v139
    %988 = vmatpush.msra.mxu0 %v137
    %989 = vmatpush.msra.mxu0 %v135
    %990 = vmatpush.msra.mxu0 %v133
    %991 = vmatpush.msra.mxu0 %v131
    %992 = vmatpush.msra.mxu0 %v129
    %993 = vmatpush.msra.mxu0 %v127
    %994 = vmatpush.msra.mxu0 %v125
    %995 = vmatpush.msra.mxu0 %v123
    %996 = vmatpush.msra.mxu0 %v121
    %997 = vmatmul.f32.gmra.mxu0 %v869
    %v998 = vpop.f32.mrf.mxu0
    %v999 = vadd.f32 %v979, %v998
    %1000 = vdwg.mxu0
    %1001 = vmatpush.msra.mxu0 %v183
    %1002 = vmatpush.msra.mxu0 %v181
    %1003 = vmatpush.msra.mxu0 %v179
    %1004 = vmatpush.msra.mxu0 %v177
    %1005 = vmatpush.msra.mxu0 %v175
    %1006 = vmatpush.msra.mxu0 %v173
    %1007 = vmatpush.msra.mxu0 %v171
    %1008 = vmatpush.msra.mxu0 %v169
    %1009 = vmatpush.msra.mxu0 %v167
    %1010 = vmatpush.msra.mxu0 %v165
    %1011 = vmatpush.msra.mxu0 %v163
    %1012 = vmatpush.msra.mxu0 %v161
    %1013 = vmatpush.msra.mxu0 %v159
    %1014 = vmatpush.msra.mxu0 %v157
    %1015 = vmatpush.msra.mxu0 %v155
    %1016 = vmatpush.msra.mxu0 %v153
    %1017 = vmatmul.f32.gmra.mxu0 %v870
    %v1018 = vpop.f32.mrf.mxu0
    %v1019 = vadd.f32 %v999, %v1018
    %1020 = vdwg.mxu0
    %1021 = vmatpush.msra.mxu0 0.0
    %1022 = vmatpush.msra.mxu0 0.0
    %1023 = vmatpush.msra.mxu0 0.0
    %1024 = vmatpush.msra.mxu0 0.0
    %1025 = vmatpush.msra.mxu0 0.0
    %1026 = vmatpush.msra.mxu0 0.0
    %1027 = vmatpush.msra.mxu0 0.0
    %1028 = vmatpush.msra.mxu0 0.0
    %1029 = vmatpush.msra.mxu0 0.0
    %1030 = vmatpush.msra.mxu0 0.0
    %1031 = vmatpush.msra.mxu0 0.0
    %1032 = vmatpush.msra.mxu0 0.0
    %1033 = vmatpush.msra.mxu0 0.0
    %1034 = vmatpush.msra.mxu0 0.0
    %1035 = vmatpush.msra.mxu0 %v187
    %1036 = vmatpush.msra.mxu0 %v185
    %1037 = vmatmul.f32.gmra.mxu0 %v879
    %v1038 = vpop.f32.mrf.mxu0
    %v1039 = vadd.f32 %v1019, %v1038
    %1040 = vdwg.mxu0
    %1041 = vmatpush.msra.mxu0 %v218
    %1042 = vmatpush.msra.mxu0 %v216
    %1043 = vmatpush.msra.mxu0 %v214
    %1044 = vmatpush.msra.mxu0 %v212
    %1045 = vmatpush.msra.mxu0 %v210
    %1046 = vmatpush.msra.mxu0 %v208
    %1047 = vmatpush.msra.mxu0 %v206
    %1048 = vmatpush.msra.mxu0 %v204
    %1049 = vmatpush.msra.mxu0 %v202
    %1050 = vmatpush.msra.mxu0 %v200
    %1051 = vmatpush.msra.mxu0 %v198
    %1052 = vmatpush.msra.mxu0 %v196
    %1053 = vmatpush.msra.mxu0 %v194
    %1054 = vmatpush.msra.mxu0 %v192
    %1055 = vmatpush.msra.mxu0 %v190
    %1056 = vmatpush.msra.mxu0 %v188
    %1057 = vmatmul.f32.gmra.mxu0 %v959
    %v1058 = vpop.f32.mrf.mxu0
    %v1059 = vadd.f32 0.0, %v1058
    %1060 = vdwg.mxu0
    %1061 = vmatpush.msra.mxu0 %v250
    %1062 = vmatpush.msra.mxu0 %v248
    %1063 = vmatpush.msra.mxu0 %v246
    %1064 = vmatpush.msra.mxu0 %v244
    %1065 = vmatpush.msra.mxu0 %v242
    %1066 = vmatpush.msra.mxu0 %v240
    %1067 = vmatpush.msra.mxu0 %v238
    %1068 = vmatpush.msra.mxu0 %v236
    %1069 = vmatpush.msra.mxu0 %v234
    %1070 = vmatpush.msra.mxu0 %v232
    %1071 = vmatpush.msra.mxu0 %v230
    %1072 = vmatpush.msra.mxu0 %v228
    %1073 = vmatpush.msra.mxu0 %v226
    %1074 = vmatpush.msra.mxu0 %v224
    %1075 = vmatpush.msra.mxu0 %v222
    %1076 = vmatpush.msra.mxu0 %v220
    %1077 = vmatmul.f32.gmra.mxu0 %v1039
    %v1078 = vpop.f32.mrf.mxu0
    %v1079 = vadd.f32 %v1059, %v1078
    %1080 = vdwg.mxu0
    %1081 = vmatpush.msra.mxu0 %v219
    %1082 = vmatpush.msra.mxu0 %v217
    %1083 = vmatpush.msra.mxu0 %v215
    %1084 = vmatpush.msra.mxu0 %v213
    %1085 = vmatpush.msra.mxu0 %v211
    %1086 = vmatpush.msra.mxu0 %v209
    %1087 = vmatpush.msra.mxu0 %v207
    %1088 = vmatpush.msra.mxu0 %v205
    %1089 = vmatpush.msra.mxu0 %v203
    %1090 = vmatpush.msra.mxu0 %v201
    %1091 = vmatpush.msra.mxu0 %v199
    %1092 = vmatpush.msra.mxu0 %v197
    %1093 = vmatpush.msra.mxu0 %v195
    %1094 = vmatpush.msra.mxu0 %v193
    %1095 = vmatpush.msra.mxu0 %v191
    %1096 = vmatpush.msra.mxu0 %v189
    %1097 = vmatmul.f32.gmra.mxu0 %v959
    %v1098 = vpop.f32.mrf.mxu0
    %v1099 = vadd.f32 0.0, %v1098
    %1100 = vdwg.mxu0
    %1101 = vmatpush.msra.mxu0 %v251
    %1102 = vmatpush.msra.mxu0 %v249
    %1103 = vmatpush.msra.mxu0 %v247
    %1104 = vmatpush.msra.mxu0 %v245
    %1105 = vmatpush.msra.mxu0 %v243
    %1106 = vmatpush.msra.mxu0 %v241
    %1107 = vmatpush.msra.mxu0 %v239
    %1108 = vmatpush.msra.mxu0 %v237
    %1109 = vmatpush.msra.mxu0 %v235
    %1110 = vmatpush.msra.mxu0 %v233
    %1111 = vmatpush.msra.mxu0 %v231
    %1112 = vmatpush.msra.mxu0 %v229
    %1113 = vmatpush.msra.mxu0 %v227
    %1114 = vmatpush.msra.mxu0 %v225
    %1115 = vmatpush.msra.mxu0 %v223
    %1116 = vmatpush.msra.mxu0 %v221
    %1117 = vmatmul.f32.gmra.mxu0 %v1039
    %v1118 = vpop.f32.mrf.mxu0
    %v1119 = vadd.f32 %v1099, %v1118
    %1120 = vdwg.mxu0
    %v1121 = vmul.f32 %v959, %v959
    %v1122 = vmul.f32 %v1039, %v1039
    %1123 = vmatpush.msra.mxu0 %v218
    %1124 = vmatpush.msra.mxu0 %v216
    %1125 = vmatpush.msra.mxu0 %v214
    %1126 = vmatpush.msra.mxu0 %v212
    %1127 = vmatpush.msra.mxu0 %v210
    %1128 = vmatpush.msra.mxu0 %v208
    %1129 = vmatpush.msra.mxu0 %v206
    %1130 = vmatpush.msra.mxu0 %v204
    %1131 = vmatpush.msra.mxu0 %v202
    %1132 = vmatpush.msra.mxu0 %v200
    %1133 = vmatpush.msra.mxu0 %v198
    %1134 = vmatpush.msra.mxu0 %v196
    %1135 = vmatpush.msra.mxu0 %v194
    %1136 = vmatpush.msra.mxu0 %v192
    %1137 = vmatpush.msra.mxu0 %v190
    %1138 = vmatpush.msra.mxu0 %v188
    %1139 = vmatmul.f32.gmra.mxu0 %v1121
    %v1140 = vpop.f32.mrf.mxu0
    %v1141 = vadd.f32 0.0, %v1140
    %1142 = vdwg.mxu0
    %1143 = vmatpush.msra.mxu0 %v250
    %1144 = vmatpush.msra.mxu0 %v248
    %1145 = vmatpush.msra.mxu0 %v246
    %1146 = vmatpush.msra.mxu0 %v244
    %1147 = vmatpush.msra.mxu0 %v242
    %1148 = vmatpush.msra.mxu0 %v240
    %1149 = vmatpush.msra.mxu0 %v238
    %1150 = vmatpush.msra.mxu0 %v236
    %1151 = vmatpush.msra.mxu0 %v234
    %1152 = vmatpush.msra.mxu0 %v232
    %1153 = vmatpush.msra.mxu0 %v230
    %1154 = vmatpush.msra.mxu0 %v228
    %1155 = vmatpush.msra.mxu0 %v226
    %1156 = vmatpush.msra.mxu0 %v224
    %1157 = vmatpush.msra.mxu0 %v222
    %1158 = vmatpush.msra.mxu0 %v220
    %1159 = vmatmul.f32.gmra.mxu0 %v1122
    %v1160 = vpop.f32.mrf.mxu0
    %v1161 = vadd.f32 %v1141, %v1160
    %1162 = vdwg.mxu0
    %1163 = vmatpush.msra.mxu0 %v219
    %1164 = vmatpush.msra.mxu0 %v217
    %1165 = vmatpush.msra.mxu0 %v215
    %1166 = vmatpush.msra.mxu0 %v213
    %1167 = vmatpush.msra.mxu0 %v211
    %1168 = vmatpush.msra.mxu0 %v209
    %1169 = vmatpush.msra.mxu0 %v207
    %1170 = vmatpush.msra.mxu0 %v205
    %1171 = vmatpush.msra.mxu0 %v203
    %1172 = vmatpush.msra.mxu0 %v201
    %1173 = vmatpush.msra.mxu0 %v199
    %1174 = vmatpush.msra.mxu0 %v197
    %1175 = vmatpush.msra.mxu0 %v195
    %1176 = vmatpush.msra.mxu0 %v193
    %1177 = vmatpush.msra.mxu0 %v191
    %1178 = vmatpush.msra.mxu0 %v189
    %1179 = vmatmul.f32.gmra.mxu0 %v1121
    %v1180 = vpop.f32.mrf.mxu0
    %v1181 = vadd.f32 0.0, %v1180
    %1182 = vdwg.mxu0
    %1183 = vmatpush.msra.mxu0 %v251
    %1184 = vmatpush.msra.mxu0 %v249
    %1185 = vmatpush.msra.mxu0 %v247
    %1186 = vmatpush.msra.mxu0 %v245
    %1187 = vmatpush.msra.mxu0 %v243
    %1188 = vmatpush.msra.mxu0 %v241
    %1189 = vmatpush.msra.mxu0 %v239
    %1190 = vmatpush.msra.mxu0 %v237
    %1191 = vmatpush.msra.mxu0 %v235
    %1192 = vmatpush.msra.mxu0 %v233
    %1193 = vmatpush.msra.mxu0 %v231
    %1194 = vmatpush.msra.mxu0 %v229
    %1195 = vmatpush.msra.mxu0 %v227
    %1196 = vmatpush.msra.mxu0 %v225
    %1197 = vmatpush.msra.mxu0 %v223
    %1198 = vmatpush.msra.mxu0 %v221
    %1199 = vmatmul.f32.gmra.mxu0 %v1122
    %v1200 = vpop.f32.mrf.mxu0
    %v1201 = vadd.f32 %v1181, %v1200
    %1202 = vdwg.mxu0
    %v1203 = vmul.f32 %v1079, %v1079
    %v1204 = vmul.f32 %v1119, %v1119
    %v1205 = vsub.f32 %v1161, %v1203
    %v1206 = vsub.f32 %v1201, %v1204
    %v1207 = vsub.f32 %v959, %v1079
    %v1208 = vsub.f32 %v1039, %v1119
    %v1209 = vadd.f32 %v1205, 1e-12
    %v1210 = vadd.f32 %v1206, 1e-12
    %v1211 = vrsqrt.pop %v1209
    %v1212 = vmul.f32 %v1211, %v1209
    %v1213 = vmul.f32 %v1212, %v1211
    %v1214 = vmul.f32 0.5, %v1213
    %v1215 = vsub.f32 1.5, %v1214
    %v1216 = vmul.f32 %v1211, %v1215
    %vm1217 = vweird.f32 %v1209
    %vm1218 = vweird.f32 %v1211
    %vm1219 = vmor %vm1217, %vm1218
    %v1220 = vsel %vm1219, %v1211, %v1216
    %v1221 = vrsqrt.pop %v1210
    %v1222 = vmul.f32 %v1221, %v1210
    %v1223 = vmul.f32 %v1222, %v1221
    %v1224 = vmul.f32 0.5, %v1223
    %v1225 = vsub.f32 1.5, %v1224
    %v1226 = vmul.f32 %v1221, %v1225
    %vm1227 = vweird.f32 %v1210
    %vm1228 = vweird.f32 %v1221
    %vm1229 = vmor %vm1227, %vm1228
    %v1230 = vsel %vm1229, %v1221, %v1226
    %v1231 = vmul.f32 %v1207, %v1220
    %v1232 = vmul.f32 %v1208, %v1230
    %v1234 = vperm.slane %v764, 0
    %v1235 = vperm.slane %v764, 1
    %v1236 = vperm.slane %v764, 2
    %v1237 = vperm.slane %v764, 3
    %1242 = vmatpush.msra.mxu0 %v440
    %1243 = vmatpush.msra.mxu0 %v436
    %1244 = vmatpush.msra.mxu0 %v432
    %1245 = vmatpush.msra.mxu0 %v428
    %1246 = vmatpush.msra.mxu0 %v424
    %1247 = vmatpush.msra.mxu0 %v420
    %1248 = vmatpush.msra.mxu0 %v416
    %1249 = vmatpush.msra.mxu0 %v412
    %1250 = vmatpush.msra.mxu0 %v408
    %1251 = vmatpush.msra.mxu0 %v404
    %1252 = vmatpush.msra.mxu0 %v400
    %1253 = vmatpush.msra.mxu0 %v396
    %1254 = vmatpush.msra.mxu0 %v392
    %1255 = vmatpush.msra.mxu0 %v388
    %1256 = vmatpush.msra.mxu0 %v384
    %1257 = vmatpush.msra.mxu0 %v380
    %1258 = vmatmul.f32.gmra.mxu0 %v1231
    %v1259 = vpop.f32.mrf.mxu0
    %v1260 = vadd.f32 %v1234, %v1259
    %1261 = vdwg.mxu0
    %1262 = vmatpush.msra.mxu0 %v504
    %1263 = vmatpush.msra.mxu0 %v500
    %1264 = vmatpush.msra.mxu0 %v496
    %1265 = vmatpush.msra.mxu0 %v492
    %1266 = vmatpush.msra.mxu0 %v488
    %1267 = vmatpush.msra.mxu0 %v484
    %1268 = vmatpush.msra.mxu0 %v480
    %1269 = vmatpush.msra.mxu0 %v476
    %1270 = vmatpush.msra.mxu0 %v472
    %1271 = vmatpush.msra.mxu0 %v468
    %1272 = vmatpush.msra.mxu0 %v464
    %1273 = vmatpush.msra.mxu0 %v460
    %1274 = vmatpush.msra.mxu0 %v456
    %1275 = vmatpush.msra.mxu0 %v452
    %1276 = vmatpush.msra.mxu0 %v448
    %1277 = vmatpush.msra.mxu0 %v444
    %1278 = vmatmul.f32.gmra.mxu0 %v1232
    %v1279 = vpop.f32.mrf.mxu0
    %v1280 = vadd.f32 %v1260, %v1279
    %1281 = vdwg.mxu0
    %1282 = vmatpush.msra.mxu0 %v441
    %1283 = vmatpush.msra.mxu0 %v437
    %1284 = vmatpush.msra.mxu0 %v433
    %1285 = vmatpush.msra.mxu0 %v429
    %1286 = vmatpush.msra.mxu0 %v425
    %1287 = vmatpush.msra.mxu0 %v421
    %1288 = vmatpush.msra.mxu0 %v417
    %1289 = vmatpush.msra.mxu0 %v413
    %1290 = vmatpush.msra.mxu0 %v409
    %1291 = vmatpush.msra.mxu0 %v405
    %1292 = vmatpush.msra.mxu0 %v401
    %1293 = vmatpush.msra.mxu0 %v397
    %1294 = vmatpush.msra.mxu0 %v393
    %1295 = vmatpush.msra.mxu0 %v389
    %1296 = vmatpush.msra.mxu0 %v385
    %1297 = vmatpush.msra.mxu0 %v381
    %1298 = vmatmul.f32.gmra.mxu0 %v1231
    %v1299 = vpop.f32.mrf.mxu0
    %v1300 = vadd.f32 %v1235, %v1299
    %1301 = vdwg.mxu0
    %1302 = vmatpush.msra.mxu0 %v505
    %1303 = vmatpush.msra.mxu0 %v501
    %1304 = vmatpush.msra.mxu0 %v497
    %1305 = vmatpush.msra.mxu0 %v493
    %1306 = vmatpush.msra.mxu0 %v489
    %1307 = vmatpush.msra.mxu0 %v485
    %1308 = vmatpush.msra.mxu0 %v481
    %1309 = vmatpush.msra.mxu0 %v477
    %1310 = vmatpush.msra.mxu0 %v473
    %1311 = vmatpush.msra.mxu0 %v469
    %1312 = vmatpush.msra.mxu0 %v465
    %1313 = vmatpush.msra.mxu0 %v461
    %1314 = vmatpush.msra.mxu0 %v457
    %1315 = vmatpush.msra.mxu0 %v453
    %1316 = vmatpush.msra.mxu0 %v449
    %1317 = vmatpush.msra.mxu0 %v445
    %1318 = vmatmul.f32.gmra.mxu0 %v1232
    %v1319 = vpop.f32.mrf.mxu0
    %v1320 = vadd.f32 %v1300, %v1319
    %1321 = vdwg.mxu0
    %1322 = vmatpush.msra.mxu0 %v442
    %1323 = vmatpush.msra.mxu0 %v438
    %1324 = vmatpush.msra.mxu0 %v434
    %1325 = vmatpush.msra.mxu0 %v430
    %1326 = vmatpush.msra.mxu0 %v426
    %1327 = vmatpush.msra.mxu0 %v422
    %1328 = vmatpush.msra.mxu0 %v418
    %1329 = vmatpush.msra.mxu0 %v414
    %1330 = vmatpush.msra.mxu0 %v410
    %1331 = vmatpush.msra.mxu0 %v406
    %1332 = vmatpush.msra.mxu0 %v402
    %1333 = vmatpush.msra.mxu0 %v398
    %1334 = vmatpush.msra.mxu0 %v394
    %1335 = vmatpush.msra.mxu0 %v390
    %1336 = vmatpush.msra.mxu0 %v386
    %1337 = vmatpush.msra.mxu0 %v382
    %1338 = vmatmul.f32.gmra.mxu0 %v1231
    %v1339 = vpop.f32.mrf.mxu0
    %v1340 = vadd.f32 %v1236, %v1339
    %1341 = vdwg.mxu0
    %1342 = vmatpush.msra.mxu0 %v506
    %1343 = vmatpush.msra.mxu0 %v502
    %1344 = vmatpush.msra.mxu0 %v498
    %1345 = vmatpush.msra.mxu0 %v494
    %1346 = vmatpush.msra.mxu0 %v490
    %1347 = vmatpush.msra.mxu0 %v486
    %1348 = vmatpush.msra.mxu0 %v482
    %1349 = vmatpush.msra.mxu0 %v478
    %1350 = vmatpush.msra.mxu0 %v474
    %1351 = vmatpush.msra.mxu0 %v470
    %1352 = vmatpush.msra.mxu0 %v466
    %1353 = vmatpush.msra.mxu0 %v462
    %1354 = vmatpush.msra.mxu0 %v458
    %1355 = vmatpush.msra.mxu0 %v454
    %1356 = vmatpush.msra.mxu0 %v450
    %1357 = vmatpush.msra.mxu0 %v446
    %1358 = vmatmul.f32.gmra.mxu0 %v1232
    %v1359 = vpop.f32.mrf.mxu0
    %v1360 = vadd.f32 %v1340, %v1359
    %1361 = vdwg.mxu0
    %1362 = vmatpush.msra.mxu0 %v443
    %1363 = vmatpush.msra.mxu0 %v439
    %1364 = vmatpush.msra.mxu0 %v435
    %1365 = vmatpush.msra.mxu0 %v431
    %1366 = vmatpush.msra.mxu0 %v427
    %1367 = vmatpush.msra.mxu0 %v423
    %1368 = vmatpush.msra.mxu0 %v419
    %1369 = vmatpush.msra.mxu0 %v415
    %1370 = vmatpush.msra.mxu0 %v411
    %1371 = vmatpush.msra.mxu0 %v407
    %1372 = vmatpush.msra.mxu0 %v403
    %1373 = vmatpush.msra.mxu0 %v399
    %1374 = vmatpush.msra.mxu0 %v395
    %1375 = vmatpush.msra.mxu0 %v391
    %1376 = vmatpush.msra.mxu0 %v387
    %1377 = vmatpush.msra.mxu0 %v383
    %1378 = vmatmul.f32.gmra.mxu0 %v1231
    %v1379 = vpop.f32.mrf.mxu0
    %v1380 = vadd.f32 %v1237, %v1379
    %1381 = vdwg.mxu0
    %1382 = vmatpush.msra.mxu0 %v507
    %1383 = vmatpush.msra.mxu0 %v503
    %1384 = vmatpush.msra.mxu0 %v499
    %1385 = vmatpush.msra.mxu0 %v495
    %1386 = vmatpush.msra.mxu0 %v491
    %1387 = vmatpush.msra.mxu0 %v487
    %1388 = vmatpush.msra.mxu0 %v483
    %1389 = vmatpush.msra.mxu0 %v479
    %1390 = vmatpush.msra.mxu0 %v475
    %1391 = vmatpush.msra.mxu0 %v471
    %1392 = vmatpush.msra.mxu0 %v467
    %1393 = vmatpush.msra.mxu0 %v463
    %1394 = vmatpush.msra.mxu0 %v459
    %1395 = vmatpush.msra.mxu0 %v455
    %1396 = vmatpush.msra.mxu0 %v451
    %1397 = vmatpush.msra.mxu0 %v447
    %1398 = vmatmul.f32.gmra.mxu0 %v1232
    %v1399 = vpop.f32.mrf.mxu0
    %v1400 = vadd.f32 %v1380, %v1399
    %1401 = vdwg.mxu0
    %v1402 = vmul.f32 %v1280, %v1280
    %v1403 = vmul.f32 %v1320, %v1320
    %v1404 = vmul.f32 %v1360, %v1360
    %v1405 = vmul.f32 %v1400, %v1400
    %v1407 = vperm.slane %v766, 0
    %v1408 = vperm.slane %v766, 1
    %v1409 = vperm.slane %v766, 2
    %v1410 = vperm.slane %v766, 3
    %1415 = vmatpush.msra.mxu0 %v568
    %1416 = vmatpush.msra.mxu0 %v564
    %1417 = vmatpush.msra.mxu0 %v560
    %1418 = vmatpush.msra.mxu0 %v556
    %1419 = vmatpush.msra.mxu0 %v552
    %1420 = vmatpush.msra.mxu0 %v548
    %1421 = vmatpush.msra.mxu0 %v544
    %1422 = vmatpush.msra.mxu0 %v540
    %1423 = vmatpush.msra.mxu0 %v536
    %1424 = vmatpush.msra.mxu0 %v532
    %1425 = vmatpush.msra.mxu0 %v528
    %1426 = vmatpush.msra.mxu0 %v524
    %1427 = vmatpush.msra.mxu0 %v520
    %1428 = vmatpush.msra.mxu0 %v516
    %1429 = vmatpush.msra.mxu0 %v512
    %1430 = vmatpush.msra.mxu0 %v508
    %1431 = vmatmul.f32.gmra.mxu0 %v1402
    %v1432 = vpop.f32.mrf.mxu0
    %v1433 = vadd.f32 %v1407, %v1432
    %1434 = vdwg.mxu0
    %1435 = vmatpush.msra.mxu0 %v632
    %1436 = vmatpush.msra.mxu0 %v628
    %1437 = vmatpush.msra.mxu0 %v624
    %1438 = vmatpush.msra.mxu0 %v620
    %1439 = vmatpush.msra.mxu0 %v616
    %1440 = vmatpush.msra.mxu0 %v612
    %1441 = vmatpush.msra.mxu0 %v608
    %1442 = vmatpush.msra.mxu0 %v604
    %1443 = vmatpush.msra.mxu0 %v600
    %1444 = vmatpush.msra.mxu0 %v596
    %1445 = vmatpush.msra.mxu0 %v592
    %1446 = vmatpush.msra.mxu0 %v588
    %1447 = vmatpush.msra.mxu0 %v584
    %1448 = vmatpush.msra.mxu0 %v580
    %1449 = vmatpush.msra.mxu0 %v576
    %1450 = vmatpush.msra.mxu0 %v572
    %1451 = vmatmul.f32.gmra.mxu0 %v1403
    %v1452 = vpop.f32.mrf.mxu0
    %v1453 = vadd.f32 %v1433, %v1452
    %1454 = vdwg.mxu0
    %1455 = vmatpush.msra.mxu0 %v696
    %1456 = vmatpush.msra.mxu0 %v692
    %1457 = vmatpush.msra.mxu0 %v688
    %1458 = vmatpush.msra.mxu0 %v684
    %1459 = vmatpush.msra.mxu0 %v680
    %1460 = vmatpush.msra.mxu0 %v676
    %1461 = vmatpush.msra.mxu0 %v672
    %1462 = vmatpush.msra.mxu0 %v668
    %1463 = vmatpush.msra.mxu0 %v664
    %1464 = vmatpush.msra.mxu0 %v660
    %1465 = vmatpush.msra.mxu0 %v656
    %1466 = vmatpush.msra.mxu0 %v652
    %1467 = vmatpush.msra.mxu0 %v648
    %1468 = vmatpush.msra.mxu0 %v644
    %1469 = vmatpush.msra.mxu0 %v640
    %1470 = vmatpush.msra.mxu0 %v636
    %1471 = vmatmul.f32.gmra.mxu0 %v1404
    %v1472 = vpop.f32.mrf.mxu0
    %v1473 = vadd.f32 %v1453, %v1472
    %1474 = vdwg.mxu0
    %1475 = vmatpush.msra.mxu0 %v760
    %1476 = vmatpush.msra.mxu0 %v756
    %1477 = vmatpush.msra.mxu0 %v752
    %1478 = vmatpush.msra.mxu0 %v748
    %1479 = vmatpush.msra.mxu0 %v744
    %1480 = vmatpush.msra.mxu0 %v740
    %1481 = vmatpush.msra.mxu0 %v736
    %1482 = vmatpush.msra.mxu0 %v732
    %1483 = vmatpush.msra.mxu0 %v728
    %1484 = vmatpush.msra.mxu0 %v724
    %1485 = vmatpush.msra.mxu0 %v720
    %1486 = vmatpush.msra.mxu0 %v716
    %1487 = vmatpush.msra.mxu0 %v712
    %1488 = vmatpush.msra.mxu0 %v708
    %1489 = vmatpush.msra.mxu0 %v704
    %1490 = vmatpush.msra.mxu0 %v700
    %1491 = vmatmul.f32.gmra.mxu0 %v1405
    %v1492 = vpop.f32.mrf.mxu0
    %v1493 = vadd.f32 %v1473, %v1492
    %1494 = vdwg.mxu0
    %1495 = vmatpush.msra.mxu0 %v569
    %1496 = vmatpush.msra.mxu0 %v565
    %1497 = vmatpush.msra.mxu0 %v561
    %1498 = vmatpush.msra.mxu0 %v557
    %1499 = vmatpush.msra.mxu0 %v553
    %1500 = vmatpush.msra.mxu0 %v549
    %1501 = vmatpush.msra.mxu0 %v545
    %1502 = vmatpush.msra.mxu0 %v541
    %1503 = vmatpush.msra.mxu0 %v537
    %1504 = vmatpush.msra.mxu0 %v533
    %1505 = vmatpush.msra.mxu0 %v529
    %1506 = vmatpush.msra.mxu0 %v525
    %1507 = vmatpush.msra.mxu0 %v521
    %1508 = vmatpush.msra.mxu0 %v517
    %1509 = vmatpush.msra.mxu0 %v513
    %1510 = vmatpush.msra.mxu0 %v509
    %1511 = vmatmul.f32.gmra.mxu0 %v1402
    %v1512 = vpop.f32.mrf.mxu0
    %v1513 = vadd.f32 %v1408, %v1512
    %1514 = vdwg.mxu0
    %1515 = vmatpush.msra.mxu0 %v633
    %1516 = vmatpush.msra.mxu0 %v629
    %1517 = vmatpush.msra.mxu0 %v625
    %1518 = vmatpush.msra.mxu0 %v621
    %1519 = vmatpush.msra.mxu0 %v617
    %1520 = vmatpush.msra.mxu0 %v613
    %1521 = vmatpush.msra.mxu0 %v609
    %1522 = vmatpush.msra.mxu0 %v605
    %1523 = vmatpush.msra.mxu0 %v601
    %1524 = vmatpush.msra.mxu0 %v597
    %1525 = vmatpush.msra.mxu0 %v593
    %1526 = vmatpush.msra.mxu0 %v589
    %1527 = vmatpush.msra.mxu0 %v585
    %1528 = vmatpush.msra.mxu0 %v581
    %1529 = vmatpush.msra.mxu0 %v577
    %1530 = vmatpush.msra.mxu0 %v573
    %1531 = vmatmul.f32.gmra.mxu0 %v1403
    %v1532 = vpop.f32.mrf.mxu0
    %v1533 = vadd.f32 %v1513, %v1532
    %1534 = vdwg.mxu0
    %1535 = vmatpush.msra.mxu0 %v697
    %1536 = vmatpush.msra.mxu0 %v693
    %1537 = vmatpush.msra.mxu0 %v689
    %1538 = vmatpush.msra.mxu0 %v685
    %1539 = vmatpush.msra.mxu0 %v681
    %1540 = vmatpush.msra.mxu0 %v677
    %1541 = vmatpush.msra.mxu0 %v673
    %1542 = vmatpush.msra.mxu0 %v669
    %1543 = vmatpush.msra.mxu0 %v665
    %1544 = vmatpush.msra.mxu0 %v661
    %1545 = vmatpush.msra.mxu0 %v657
    %1546 = vmatpush.msra.mxu0 %v653
    %1547 = vmatpush.msra.mxu0 %v649
    %1548 = vmatpush.msra.mxu0 %v645
    %1549 = vmatpush.msra.mxu0 %v641
    %1550 = vmatpush.msra.mxu0 %v637
    %1551 = vmatmul.f32.gmra.mxu0 %v1404
    %v1552 = vpop.f32.mrf.mxu0
    %v1553 = vadd.f32 %v1533, %v1552
    %1554 = vdwg.mxu0
    %1555 = vmatpush.msra.mxu0 %v761
    %1556 = vmatpush.msra.mxu0 %v757
    %1557 = vmatpush.msra.mxu0 %v753
    %1558 = vmatpush.msra.mxu0 %v749
    %1559 = vmatpush.msra.mxu0 %v745
    %1560 = vmatpush.msra.mxu0 %v741
    %1561 = vmatpush.msra.mxu0 %v737
    %1562 = vmatpush.msra.mxu0 %v733
    %1563 = vmatpush.msra.mxu0 %v729
    %1564 = vmatpush.msra.mxu0 %v725
    %1565 = vmatpush.msra.mxu0 %v721
    %1566 = vmatpush.msra.mxu0 %v717
    %1567 = vmatpush.msra.mxu0 %v713
    %1568 = vmatpush.msra.mxu0 %v709
    %1569 = vmatpush.msra.mxu0 %v705
    %1570 = vmatpush.msra.mxu0 %v701
    %1571 = vmatmul.f32.gmra.mxu0 %v1405
    %v1572 = vpop.f32.mrf.mxu0
    %v1573 = vadd.f32 %v1553, %v1572
    %1574 = vdwg.mxu0
    %1575 = vmatpush.msra.mxu0 %v570
    %1576 = vmatpush.msra.mxu0 %v566
    %1577 = vmatpush.msra.mxu0 %v562
    %1578 = vmatpush.msra.mxu0 %v558
    %1579 = vmatpush.msra.mxu0 %v554
    %1580 = vmatpush.msra.mxu0 %v550
    %1581 = vmatpush.msra.mxu0 %v546
    %1582 = vmatpush.msra.mxu0 %v542
    %1583 = vmatpush.msra.mxu0 %v538
    %1584 = vmatpush.msra.mxu0 %v534
    %1585 = vmatpush.msra.mxu0 %v530
    %1586 = vmatpush.msra.mxu0 %v526
    %1587 = vmatpush.msra.mxu0 %v522
    %1588 = vmatpush.msra.mxu0 %v518
    %1589 = vmatpush.msra.mxu0 %v514
    %1590 = vmatpush.msra.mxu0 %v510
    %1591 = vmatmul.f32.gmra.mxu0 %v1402
    %v1592 = vpop.f32.mrf.mxu0
    %v1593 = vadd.f32 %v1409, %v1592
    %1594 = vdwg.mxu0
    %1595 = vmatpush.msra.mxu0 %v634
    %1596 = vmatpush.msra.mxu0 %v630
    %1597 = vmatpush.msra.mxu0 %v626
    %1598 = vmatpush.msra.mxu0 %v622
    %1599 = vmatpush.msra.mxu0 %v618
    %1600 = vmatpush.msra.mxu0 %v614
    %1601 = vmatpush.msra.mxu0 %v610
    %1602 = vmatpush.msra.mxu0 %v606
    %1603 = vmatpush.msra.mxu0 %v602
    %1604 = vmatpush.msra.mxu0 %v598
    %1605 = vmatpush.msra.mxu0 %v594
    %1606 = vmatpush.msra.mxu0 %v590
    %1607 = vmatpush.msra.mxu0 %v586
    %1608 = vmatpush.msra.mxu0 %v582
    %1609 = vmatpush.msra.mxu0 %v578
    %1610 = vmatpush.msra.mxu0 %v574
    %1611 = vmatmul.f32.gmra.mxu0 %v1403
    %v1612 = vpop.f32.mrf.mxu0
    %v1613 = vadd.f32 %v1593, %v1612
    %1614 = vdwg.mxu0
    %1615 = vmatpush.msra.mxu0 %v698
    %1616 = vmatpush.msra.mxu0 %v694
    %1617 = vmatpush.msra.mxu0 %v690
    %1618 = vmatpush.msra.mxu0 %v686
    %1619 = vmatpush.msra.mxu0 %v682
    %1620 = vmatpush.msra.mxu0 %v678
    %1621 = vmatpush.msra.mxu0 %v674
    %1622 = vmatpush.msra.mxu0 %v670
    %1623 = vmatpush.msra.mxu0 %v666
    %1624 = vmatpush.msra.mxu0 %v662
    %1625 = vmatpush.msra.mxu0 %v658
    %1626 = vmatpush.msra.mxu0 %v654
    %1627 = vmatpush.msra.mxu0 %v650
    %1628 = vmatpush.msra.mxu0 %v646
    %1629 = vmatpush.msra.mxu0 %v642
    %1630 = vmatpush.msra.mxu0 %v638
    %1631 = vmatmul.f32.gmra.mxu0 %v1404
    %v1632 = vpop.f32.mrf.mxu0
    %v1633 = vadd.f32 %v1613, %v1632
    %1634 = vdwg.mxu0
    %1635 = vmatpush.msra.mxu0 %v762
    %1636 = vmatpush.msra.mxu0 %v758
    %1637 = vmatpush.msra.mxu0 %v754
    %1638 = vmatpush.msra.mxu0 %v750
    %1639 = vmatpush.msra.mxu0 %v746
    %1640 = vmatpush.msra.mxu0 %v742
    %1641 = vmatpush.msra.mxu0 %v738
    %1642 = vmatpush.msra.mxu0 %v734
    %1643 = vmatpush.msra.mxu0 %v730
    %1644 = vmatpush.msra.mxu0 %v726
    %1645 = vmatpush.msra.mxu0 %v722
    %1646 = vmatpush.msra.mxu0 %v718
    %1647 = vmatpush.msra.mxu0 %v714
    %1648 = vmatpush.msra.mxu0 %v710
    %1649 = vmatpush.msra.mxu0 %v706
    %1650 = vmatpush.msra.mxu0 %v702
    %1651 = vmatmul.f32.gmra.mxu0 %v1405
    %v1652 = vpop.f32.mrf.mxu0
    %v1653 = vadd.f32 %v1633, %v1652
    %1654 = vdwg.mxu0
    %1655 = vmatpush.msra.mxu0 %v571
    %1656 = vmatpush.msra.mxu0 %v567
    %1657 = vmatpush.msra.mxu0 %v563
    %1658 = vmatpush.msra.mxu0 %v559
    %1659 = vmatpush.msra.mxu0 %v555
    %1660 = vmatpush.msra.mxu0 %v551
    %1661 = vmatpush.msra.mxu0 %v547
    %1662 = vmatpush.msra.mxu0 %v543
    %1663 = vmatpush.msra.mxu0 %v539
    %1664 = vmatpush.msra.mxu0 %v535
    %1665 = vmatpush.msra.mxu0 %v531
    %1666 = vmatpush.msra.mxu0 %v527
    %1667 = vmatpush.msra.mxu0 %v523
    %1668 = vmatpush.msra.mxu0 %v519
    %1669 = vmatpush.msra.mxu0 %v515
    %1670 = vmatpush.msra.mxu0 %v511
    %1671 = vmatmul.f32.gmra.mxu0 %v1402
    %v1672 = vpop.f32.mrf.mxu0
    %v1673 = vadd.f32 %v1410, %v1672
    %1674 = vdwg.mxu0
    %1675 = vmatpush.msra.mxu0 %v635
    %1676 = vmatpush.msra.mxu0 %v631
    %1677 = vmatpush.msra.mxu0 %v627
    %1678 = vmatpush.msra.mxu0 %v623
    %1679 = vmatpush.msra.mxu0 %v619
    %1680 = vmatpush.msra.mxu0 %v615
    %1681 = vmatpush.msra.mxu0 %v611
    %1682 = vmatpush.msra.mxu0 %v607
    %1683 = vmatpush.msra.mxu0 %v603
    %1684 = vmatpush.msra.mxu0 %v599
    %1685 = vmatpush.msra.mxu0 %v595
    %1686 = vmatpush.msra.mxu0 %v591
    %1687 = vmatpush.msra.mxu0 %v587
    %1688 = vmatpush.msra.mxu0 %v583
    %1689 = vmatpush.msra.mxu0 %v579
    %1690 = vmatpush.msra.mxu0 %v575
    %1691 = vmatmul.f32.gmra.mxu0 %v1403
    %v1692 = vpop.f32.mrf.mxu0
    %v1693 = vadd.f32 %v1673, %v1692
    %1694 = vdwg.mxu0
    %1695 = vmatpush.msra.mxu0 %v699
    %1696 = vmatpush.msra.mxu0 %v695
    %1697 = vmatpush.msra.mxu0 %v691
    %1698 = vmatpush.msra.mxu0 %v687
    %1699 = vmatpush.msra.mxu0 %v683
    %1700 = vmatpush.msra.mxu0 %v679
    %1701 = vmatpush.msra.mxu0 %v675
    %1702 = vmatpush.msra.mxu0 %v671
    %1703 = vmatpush.msra.mxu0 %v667
    %1704 = vmatpush.msra.mxu0 %v663
    %1705 = vmatpush.msra.mxu0 %v659
    %1706 = vmatpush.msra.mxu0 %v655
    %1707 = vmatpush.msra.mxu0 %v651
    %1708 = vmatpush.msra.mxu0 %v647
    %1709 = vmatpush.msra.mxu0 %v643
    %1710 = vmatpush.msra.mxu0 %v639
    %1711 = vmatmul.f32.gmra.mxu0 %v1404
    %v1712 = vpop.f32.mrf.mxu0
    %v1713 = vadd.f32 %v1693, %v1712
    %1714 = vdwg.mxu0
    %1715 = vmatpush.msra.mxu0 %v763
    %1716 = vmatpush.msra.mxu0 %v759
    %1717 = vmatpush.msra.mxu0 %v755
    %1718 = vmatpush.msra.mxu0 %v751
    %1719 = vmatpush.msra.mxu0 %v747
    %1720 = vmatpush.msra.mxu0 %v743
    %1721 = vmatpush.msra.mxu0 %v739
    %1722 = vmatpush.msra.mxu0 %v735
    %1723 = vmatpush.msra.mxu0 %v731
    %1724 = vmatpush.msra.mxu0 %v727
    %1725 = vmatpush.msra.mxu0 %v723
    %1726 = vmatpush.msra.mxu0 %v719
    %1727 = vmatpush.msra.mxu0 %v715
    %1728 = vmatpush.msra.mxu0 %v711
    %1729 = vmatpush.msra.mxu0 %v707
    %1730 = vmatpush.msra.mxu0 %v703
    %1731 = vmatmul.f32.gmra.mxu0 %v1405
    %v1732 = vpop.f32.mrf.mxu0
    %v1733 = vadd.f32 %v1713, %v1732
    %1734 = vdwg.mxu0
    %v1735 = vmul.f32 %v1493, %v1493
    %v1736 = vmul.f32 %v1573, %v1573
    %v1737 = vmul.f32 %v1653, %v1653
    %v1738 = vmul.f32 %v1733, %v1733
    %v1740 = vperm.slane %v770, 0
    %v1741 = vperm.slane %v770, 1
    %1744 = vmatpush.msra.mxu0 %v282
    %1745 = vmatpush.msra.mxu0 %v280
    %1746 = vmatpush.msra.mxu0 %v278
    %1747 = vmatpush.msra.mxu0 %v276
    %1748 = vmatpush.msra.mxu0 %v274
    %1749 = vmatpush.msra.mxu0 %v272
    %1750 = vmatpush.msra.mxu0 %v270
    %1751 = vmatpush.msra.mxu0 %v268
    %1752 = vmatpush.msra.mxu0 %v266
    %1753 = vmatpush.msra.mxu0 %v264
    %1754 = vmatpush.msra.mxu0 %v262
    %1755 = vmatpush.msra.mxu0 %v260
    %1756 = vmatpush.msra.mxu0 %v258
    %1757 = vmatpush.msra.mxu0 %v256
    %1758 = vmatpush.msra.mxu0 %v254
    %1759 = vmatpush.msra.mxu0 %v252
    %1760 = vmatmul.f32.gmra.mxu0 %v1735
    %v1761 = vpop.f32.mrf.mxu0
    %v1762 = vadd.f32 %v1740, %v1761
    %1763 = vdwg.mxu0
    %1764 = vmatpush.msra.mxu0 %v314
    %1765 = vmatpush.msra.mxu0 %v312
    %1766 = vmatpush.msra.mxu0 %v310
    %1767 = vmatpush.msra.mxu0 %v308
    %1768 = vmatpush.msra.mxu0 %v306
    %1769 = vmatpush.msra.mxu0 %v304
    %1770 = vmatpush.msra.mxu0 %v302
    %1771 = vmatpush.msra.mxu0 %v300
    %1772 = vmatpush.msra.mxu0 %v298
    %1773 = vmatpush.msra.mxu0 %v296
    %1774 = vmatpush.msra.mxu0 %v294
    %1775 = vmatpush.msra.mxu0 %v292
    %1776 = vmatpush.msra.mxu0 %v290
    %1777 = vmatpush.msra.mxu0 %v288
    %1778 = vmatpush.msra.mxu0 %v286
    %1779 = vmatpush.msra.mxu0 %v284
    %1780 = vmatmul.f32.gmra.mxu0 %v1736
    %v1781 = vpop.f32.mrf.mxu0
    %v1782 = vadd.f32 %v1762, %v1781
    %1783 = vdwg.mxu0
    %1784 = vmatpush.msra.mxu0 %v346
    %1785 = vmatpush.msra.mxu0 %v344
    %1786 = vmatpush.msra.mxu0 %v342
    %1787 = vmatpush.msra.mxu0 %v340
    %1788 = vmatpush.msra.mxu0 %v338
    %1789 = vmatpush.msra.mxu0 %v336
    %1790 = vmatpush.msra.mxu0 %v334
    %1791 = vmatpush.msra.mxu0 %v332
    %1792 = vmatpush.msra.mxu0 %v330
    %1793 = vmatpush.msra.mxu0 %v328
    %1794 = vmatpush.msra.mxu0 %v326
    %1795 = vmatpush.msra.mxu0 %v324
    %1796 = vmatpush.msra.mxu0 %v322
    %1797 = vmatpush.msra.mxu0 %v320
    %1798 = vmatpush.msra.mxu0 %v318
    %1799 = vmatpush.msra.mxu0 %v316
    %1800 = vmatmul.f32.gmra.mxu0 %v1737
    %v1801 = vpop.f32.mrf.mxu0
    %v1802 = vadd.f32 %v1782, %v1801
    %1803 = vdwg.mxu0
    %1804 = vmatpush.msra.mxu0 %v378
    %1805 = vmatpush.msra.mxu0 %v376
    %1806 = vmatpush.msra.mxu0 %v374
    %1807 = vmatpush.msra.mxu0 %v372
    %1808 = vmatpush.msra.mxu0 %v370
    %1809 = vmatpush.msra.mxu0 %v368
    %1810 = vmatpush.msra.mxu0 %v366
    %1811 = vmatpush.msra.mxu0 %v364
    %1812 = vmatpush.msra.mxu0 %v362
    %1813 = vmatpush.msra.mxu0 %v360
    %1814 = vmatpush.msra.mxu0 %v358
    %1815 = vmatpush.msra.mxu0 %v356
    %1816 = vmatpush.msra.mxu0 %v354
    %1817 = vmatpush.msra.mxu0 %v352
    %1818 = vmatpush.msra.mxu0 %v350
    %1819 = vmatpush.msra.mxu0 %v348
    %1820 = vmatmul.f32.gmra.mxu0 %v1738
    %v1821 = vpop.f32.mrf.mxu0
    %v1822 = vadd.f32 %v1802, %v1821
    %1823 = vdwg.mxu0
    %1824 = vmatpush.msra.mxu0 %v283
    %1825 = vmatpush.msra.mxu0 %v281
    %1826 = vmatpush.msra.mxu0 %v279
    %1827 = vmatpush.msra.mxu0 %v277
    %1828 = vmatpush.msra.mxu0 %v275
    %1829 = vmatpush.msra.mxu0 %v273
    %1830 = vmatpush.msra.mxu0 %v271
    %1831 = vmatpush.msra.mxu0 %v269
    %1832 = vmatpush.msra.mxu0 %v267
    %1833 = vmatpush.msra.mxu0 %v265
    %1834 = vmatpush.msra.mxu0 %v263
    %1835 = vmatpush.msra.mxu0 %v261
    %1836 = vmatpush.msra.mxu0 %v259
    %1837 = vmatpush.msra.mxu0 %v257
    %1838 = vmatpush.msra.mxu0 %v255
    %1839 = vmatpush.msra.mxu0 %v253
    %1840 = vmatmul.f32.gmra.mxu0 %v1735
    %v1841 = vpop.f32.mrf.mxu0
    %v1842 = vadd.f32 %v1741, %v1841
    %1843 = vdwg.mxu0
    %1844 = vmatpush.msra.mxu0 %v315
    %1845 = vmatpush.msra.mxu0 %v313
    %1846 = vmatpush.msra.mxu0 %v311
    %1847 = vmatpush.msra.mxu0 %v309
    %1848 = vmatpush.msra.mxu0 %v307
    %1849 = vmatpush.msra.mxu0 %v305
    %1850 = vmatpush.msra.mxu0 %v303
    %1851 = vmatpush.msra.mxu0 %v301
    %1852 = vmatpush.msra.mxu0 %v299
    %1853 = vmatpush.msra.mxu0 %v297
    %1854 = vmatpush.msra.mxu0 %v295
    %1855 = vmatpush.msra.mxu0 %v293
    %1856 = vmatpush.msra.mxu0 %v291
    %1857 = vmatpush.msra.mxu0 %v289
    %1858 = vmatpush.msra.mxu0 %v287
    %1859 = vmatpush.msra.mxu0 %v285
    %1860 = vmatmul.f32.gmra.mxu0 %v1736
    %v1861 = vpop.f32.mrf.mxu0
    %v1862 = vadd.f32 %v1842, %v1861
    %1863 = vdwg.mxu0
    %1864 = vmatpush.msra.mxu0 %v347
    %1865 = vmatpush.msra.mxu0 %v345
    %1866 = vmatpush.msra.mxu0 %v343
    %1867 = vmatpush.msra.mxu0 %v341
    %1868 = vmatpush.msra.mxu0 %v339
    %1869 = vmatpush.msra.mxu0 %v337
    %1870 = vmatpush.msra.mxu0 %v335
    %1871 = vmatpush.msra.mxu0 %v333
    %1872 = vmatpush.msra.mxu0 %v331
    %1873 = vmatpush.msra.mxu0 %v329
    %1874 = vmatpush.msra.mxu0 %v327
    %1875 = vmatpush.msra.mxu0 %v325
    %1876 = vmatpush.msra.mxu0 %v323
    %1877 = vmatpush.msra.mxu0 %v321
    %1878 = vmatpush.msra.mxu0 %v319
    %1879 = vmatpush.msra.mxu0 %v317
    %1880 = vmatmul.f32.gmra.mxu0 %v1737
    %v1881 = vpop.f32.mrf.mxu0
    %v1882 = vadd.f32 %v1862, %v1881
    %1883 = vdwg.mxu0
    %1884 = vmatpush.msra.mxu0 %v379
    %1885 = vmatpush.msra.mxu0 %v377
    %1886 = vmatpush.msra.mxu0 %v375
    %1887 = vmatpush.msra.mxu0 %v373
    %1888 = vmatpush.msra.mxu0 %v371
    %1889 = vmatpush.msra.mxu0 %v369
    %1890 = vmatpush.msra.mxu0 %v367
    %1891 = vmatpush.msra.mxu0 %v365
    %1892 = vmatpush.msra.mxu0 %v363
    %1893 = vmatpush.msra.mxu0 %v361
    %1894 = vmatpush.msra.mxu0 %v359
    %1895 = vmatpush.msra.mxu0 %v357
    %1896 = vmatpush.msra.mxu0 %v355
    %1897 = vmatpush.msra.mxu0 %v353
    %1898 = vmatpush.msra.mxu0 %v351
    %1899 = vmatpush.msra.mxu0 %v349
    %1900 = vmatmul.f32.gmra.mxu0 %v1738
    %v1901 = vpop.f32.mrf.mxu0
    %v1902 = vadd.f32 %v1882, %v1901
    %1903 = vdwg.mxu0
    %v1906 = vrot.slane %v1902, 6
    %vm1907 = vcmask 1041408
    %v1908 = vsel %vm1907, %v1822, %v1906
    %1910 = vst [vmem:[%s5] sm:$0xf] %v1908
    // Predicated region
    $region38: #{bert_tiny_flatten_forward.1} parent=1 // pred_check
      _
    $region39: #{bert_tiny_flatten_forward.1} parent=1 // pred_check_branch
      %1912 = sbr.rel (0) target = $region41
    $region40: #{bert_tiny_flatten_forward.1} parent=1 // pred_region
      _
    $region41: #{bert_tiny_flatten_forward.1} parent=1 // pred_fallthru
      _
    // Predicated region
    $region42: #{bert_tiny_flatten_forward.1} parent=1 // pred_check
      _
    $region43: #{bert_tiny_flatten_forward.1} parent=1 // pred_check_branch
      %1914 = sbr.rel (0) target = $region45
    $region44: #{bert_tiny_flatten_forward.1} parent=1 // pred_region
      _
    $region45: #{bert_tiny_flatten_forward.1} parent=1 // pred_fallthru
      _
    %1915 = vsyncpa [#allocation3], 1
    %1916 = vsyncpa [#allocation5], 1
    %1917 = vsyncpa [#allocation8], 1

</llo_original>
